<compile_context>
chip_gen: v7x
topology: tpu7x:2x2x1
jax: 0.10.0
libtpu: 0.0.40
codegen_flags: <defaults>
</compile_context>

<pallas_src>
import functools
import math

import jax
import jax.numpy as jnp
import numpy as np
from jax.experimental import pallas as pl
from jax.experimental.pallas import tpu as pltpu

EPS = 1e-5  # nn.InstanceNorm3d default


def _tap_masks(D, H, W):
    """(27, D*H*W) f32 0/1 masks realizing ConstantPad3d(1, 0) per tap."""
    DHW = D * H * W
    pos = np.arange(DHW)
    d = pos // (H * W)
    h = (pos // W) % H
    w = pos % W
    masks = np.empty((27, DHW), np.float32)
    t = 0
    for od in (-1, 0, 1):
        for oh in (-1, 0, 1):
            for ow in (-1, 0, 1):
                m = np.ones(DHW, bool)
                if od == -1: m &= d >= 1
                if od == +1: m &= d <= D - 2
                if oh == -1: m &= h >= 1
                if oh == +1: m &= h <= H - 2
                if ow == -1: m &= w >= 1
                if ow == +1: m &= w <= W - 2
                masks[t] = m
                t += 1
    return jnp.asarray(masks)


def _residual_block3d_kernel(x_ref, mask_ref, w1_ref, w2_ref, out_ref,
                             *, C, D, H, W):
    f32 = jnp.float32
    bf16 = jnp.bfloat16
    HW = H * W
    DHW = D * H * W
    inv_n = 1.0 / DHW

    x = x_ref[0].astype(f32)                          # (C, DHW), lanes = spatial

    def conv3x3x3(src, w_ref):
        """3x3x3 'same' conv as ONE im2col MXU contraction (K = 27*C)."""
        taps = []
        t = 0
        for kd in range(3):
            for kh in range(3):
                for kw in range(3):
                    delta = (kd - 1) * HW + (kh - 1) * W + (kw - 1)
                    if (kd, kh, kw) == (1, 1, 1):
                        shifted = src                  # centre tap: no shift/mask
                    else:
                        # shifted[c, p] = src[c, p + delta]; out-of-volume
                        # sources are zeroed by the precomputed pad mask.
                        shifted = pltpu.roll(src, shift=(-delta) % DHW, axis=1)
                        shifted = shifted * mask_ref[pl.ds(t, 1), :]
                    taps.append(shifted.astype(bf16))
                    t += 1
        stack = jnp.concatenate(taps, axis=0)          # (27*C, DHW) bf16
        # Single bf16 MXU pass, f32 accumulation.  No bias: it is an exact
        # no-op through the affine=False InstanceNorm that follows.
        return jnp.dot(w_ref[...], stack, preferred_element_type=f32)

    def instance_norm(v):
        # Per-channel stats over the full volume in one pass.
        s = jnp.sum(v, axis=1, keepdims=True)          # (C, 1)
        s2 = jnp.sum(v * v, axis=1, keepdims=True)     # (C, 1)
        mean = s * inv_n
        var = jnp.maximum(s2 * inv_n - mean * mean, 0.0)   # biased (PyTorch IN)
        return (v - mean) * jax.lax.rsqrt(var + EPS)

    # conv1 -> IN -> ReLU
    mid = jnp.maximum(instance_norm(conv3x3x3(x, w1_ref)), 0.0)
    # conv2 -> IN -> residual add (residual kept in full f32)
    res = instance_norm(conv3x3x3(mid, w2_ref))
    out_ref[0] = (x + res).astype(out_ref.dtype)


def residual_block3d(x, w1, b1, w2, b2):
    """x: (N, C, D, H, W) f32; w*: (C, C, 3, 3, 3); b*: (C,)."""
    N, C, D, H, W = x.shape
    DHW = D * H * W

    # Lane-dense layout: flatten spatial dims (contiguous reshape in HBM).
    xf = x.reshape(N, C, DHW)
    # Tap-major weight matrices (C_out, 27*C_in), bf16 for a single MXU pass.
    w1m = jnp.transpose(w1, (0, 2, 3, 4, 1)).reshape(C, 27 * C).astype(jnp.bfloat16)
    w2m = jnp.transpose(w2, (0, 2, 3, 4, 1)).reshape(C, 27 * C).astype(jnp.bfloat16)
    # Biases accepted for API parity but unused: per-channel constants are
    # exactly removed by the affine=False InstanceNorm after each conv.
    del b1, b2
    masks = _tap_masks(D, H, W)                        # (27, DHW) f32, resident

    kernel = functools.partial(_residual_block3d_kernel, C=C, D=D, H=H, W=W)
    resident = lambda n: (0, 0)                        # same block every step

    out = pl.pallas_call(
        kernel,
        out_shape=jax.ShapeDtypeStruct((N, C, DHW), x.dtype),
        grid_spec=pltpu.PrefetchScalarGridSpec(
            num_scalar_prefetch=0,
            grid=(N,),
            in_specs=[
                pl.BlockSpec((1, C, DHW), lambda n: (n, 0, 0)),
                pl.BlockSpec((27, DHW), resident),
                pl.BlockSpec((C, 27 * C), resident),
                pl.BlockSpec((C, 27 * C), resident),
            ],
            out_specs=pl.BlockSpec((1, C, DHW), lambda n: (n, 0, 0)),
        ),
        compiler_params=pltpu.CompilerParams(
            dimension_semantics=("parallel",)),
    )(xf, masks, w1m, w2m)
    return out.reshape(N, C, D, H, W)


def _ref_forward(x, w1, b1, w2, b2, eps=EPS):
    """Pure-JAX full-f32 reference of the PyTorch module (biases included)."""
    def conv(v, w, b):
        y = jax.lax.conv_general_dilated(
            v, w, window_strides=(1, 1, 1),
            padding=((1, 1), (1, 1), (1, 1)),
            dimension_numbers=("NCDHW", "OIDHW", "NCDHW"),
            precision=jax.lax.Precision.HIGHEST)
        return y + b[None, :, None, None, None]

    def inorm(v):
        m = jnp.mean(v, axis=(2, 3, 4), keepdims=True)
        var = jnp.mean((v - m) ** 2, axis=(2, 3, 4), keepdims=True)
        return (v - m) * jax.lax.rsqrt(var + eps)

    h = jax.nn.relu(inorm(conv(x, w1, b1)))
    return x + inorm(conv(h, w2, b2))


if __name__ == "__main__":
    N, C, D, H, W = 2, 4, 8, 8, 8          # D*H*W = 512 (multiple of 128)
    key = jax.random.PRNGKey(0)
    kx, kw1, kb1, kw2, kb2 = jax.random.split(key, 5)

    # Deterministic synthetic parameters (shapes from nn.Conv3d(C, C, 3)).
    bound = 1.0 / math.sqrt(C * 27)
    x = jax.random.normal(kx, (N, C, D, H, W), jnp.float32)
    w1 = jax.random.uniform(kw1, (C, C, 3, 3, 3), jnp.float32, -bound, bound)
    b1 = jax.random.uniform(kb1, (C,), jnp.float32, -bound, bound)
    w2 = jax.random.uniform(kw2, (C, C, 3, 3, 3), jnp.float32, -bound, bound)
    b2 = jax.random.uniform(kb2, (C,), jnp.float32, -bound, bound)

    out = residual_block3d(x, w1, b1, w2, b2)
    jax.block_until_ready(out)

    ref = _ref_forward(x, w1, b1, w2, b2)
    assert out.shape == (N, C, D, H, W)
    # Tolerance reflects single-pass bf16 MXU operands (per perf review) vs a
    # full-f32 HIGHEST-precision reference: observed/expected error is ~1e-2
    # worst-case after two conv+IN stages; 5e-2 gives ample margin.
    assert jnp.allclose(out, ref, atol=5e-2, rtol=5e-2), "mismatch vs JAX reference"

    print("KERNEL_OK")
</pallas_src>

<mosaic_0001>
module attributes {stable_mosaic.version = 11 : i64} {
  func.func @_residual_block3d_kernel(%arg0: i32, %arg1: memref<1x4x512xf32, #tpu.memory_space<vmem>>, %arg2: memref<27x512xf32, #tpu.memory_space<vmem>>, %arg3: memref<4x108xbf16, #tpu.memory_space<vmem>>, %arg4: memref<4x108xbf16, #tpu.memory_space<vmem>>, %arg5: memref<1x4x512xf32, #tpu.memory_space<vmem>>) attributes {dimension_semantics = [#tpu.dimension_semantics<parallel>], iteration_bounds = array<i64: 2>, scalar_prefetch = 0 : i64, scratch_operands = 0 : i64, tpu.core_type = #tpu.core_type<tc>, window_params = [{transform_indices = @transform_0, window_bounds = array<i64: 1, 4, 512>}, {pipeline_mode = #tpu.pipeline_mode<synchronous>, transform_indices = @transform_1, window_bounds = array<i64: 27, 512>}, {pipeline_mode = #tpu.pipeline_mode<synchronous>, transform_indices = @transform_2, window_bounds = array<i64: 4, 108>}, {pipeline_mode = #tpu.pipeline_mode<synchronous>, transform_indices = @transform_3, window_bounds = array<i64: 4, 108>}, {transform_indices = @transform_4, window_bounds = array<i64: 1, 4, 512>}]} {
    %c0 = arith.constant 0 : index
    %c0_0 = arith.constant 0 : index
    %c0_1 = arith.constant 0 : index
    %0 = vector.load %arg1[%c0, %c0_0, %c0_1] : memref<1x4x512xf32, #tpu.memory_space<vmem>>, vector<1x4x512xf32>
    %1 = vector.shape_cast %0 : vector<1x4x512xf32> to vector<4x512xf32>
    %c73_i32 = arith.constant 73 : i32
    %2 = tpu.dynamic_rotate %1 by %c73_i32 dim 1 : vector<4x512xf32>, i32 -> vector<4x512xf32>
    %c0_2 = arith.constant 0 : index
    %c0_3 = arith.constant 0 : index
    %3 = vector.load %arg2[%c0_2, %c0_3] : memref<27x512xf32, #tpu.memory_space<vmem>>, vector<1x512xf32>
    %4 = vector.broadcast %3 : vector<1x512xf32> to vector<4x512xf32>
    %5 = arith.mulf %2, %4 : vector<4x512xf32>
    %6 = arith.truncf %5 : vector<4x512xf32> to vector<4x512xbf16>
    %c72_i32 = arith.constant 72 : i32
    %7 = tpu.dynamic_rotate %1 by %c72_i32 dim 1 : vector<4x512xf32>, i32 -> vector<4x512xf32>
    %c1 = arith.constant 1 : index
    %c0_4 = arith.constant 0 : index
    %8 = vector.load %arg2[%c1, %c0_4] : memref<27x512xf32, #tpu.memory_space<vmem>>, vector<1x512xf32>
    %9 = vector.broadcast %8 : vector<1x512xf32> to vector<4x512xf32>
    %10 = arith.mulf %7, %9 : vector<4x512xf32>
    %11 = arith.truncf %10 : vector<4x512xf32> to vector<4x512xbf16>
    %c71_i32 = arith.constant 71 : i32
    %12 = tpu.dynamic_rotate %1 by %c71_i32 dim 1 : vector<4x512xf32>, i32 -> vector<4x512xf32>
    %c2 = arith.constant 2 : index
    %c0_5 = arith.constant 0 : index
    %13 = vector.load %arg2[%c2, %c0_5] : memref<27x512xf32, #tpu.memory_space<vmem>>, vector<1x512xf32>
    %14 = vector.broadcast %13 : vector<1x512xf32> to vector<4x512xf32>
    %15 = arith.mulf %12, %14 : vector<4x512xf32>
    %16 = arith.truncf %15 : vector<4x512xf32> to vector<4x512xbf16>
    %c65_i32 = arith.constant 65 : i32
    %17 = tpu.dynamic_rotate %1 by %c65_i32 dim 1 : vector<4x512xf32>, i32 -> vector<4x512xf32>
    %c3 = arith.constant 3 : index
    %c0_6 = arith.constant 0 : index
    %18 = vector.load %arg2[%c3, %c0_6] : memref<27x512xf32, #tpu.memory_space<vmem>>, vector<1x512xf32>
    %19 = vector.broadcast %18 : vector<1x512xf32> to vector<4x512xf32>
    %20 = arith.mulf %17, %19 : vector<4x512xf32>
    %21 = arith.truncf %20 : vector<4x512xf32> to vector<4x512xbf16>
    %c64_i32 = arith.constant 64 : i32
    %22 = tpu.dynamic_rotate %1 by %c64_i32 dim 1 : vector<4x512xf32>, i32 -> vector<4x512xf32>
    %c4 = arith.constant 4 : index
    %c0_7 = arith.constant 0 : index
    %23 = vector.load %arg2[%c4, %c0_7] : memref<27x512xf32, #tpu.memory_space<vmem>>, vector<1x512xf32>
    %24 = vector.broadcast %23 : vector<1x512xf32> to vector<4x512xf32>
    %25 = arith.mulf %22, %24 : vector<4x512xf32>
    %26 = arith.truncf %25 : vector<4x512xf32> to vector<4x512xbf16>
    %c63_i32 = arith.constant 63 : i32
    %27 = tpu.dynamic_rotate %1 by %c63_i32 dim 1 : vector<4x512xf32>, i32 -> vector<4x512xf32>
    %c5 = arith.constant 5 : index
    %c0_8 = arith.constant 0 : index
    %28 = vector.load %arg2[%c5, %c0_8] : memref<27x512xf32, #tpu.memory_space<vmem>>, vector<1x512xf32>
    %29 = vector.broadcast %28 : vector<1x512xf32> to vector<4x512xf32>
    %30 = arith.mulf %27, %29 : vector<4x512xf32>
    %31 = arith.truncf %30 : vector<4x512xf32> to vector<4x512xbf16>
    %c57_i32 = arith.constant 57 : i32
    %32 = tpu.dynamic_rotate %1 by %c57_i32 dim 1 : vector<4x512xf32>, i32 -> vector<4x512xf32>
    %c6 = arith.constant 6 : index
    %c0_9 = arith.constant 0 : index
    %33 = vector.load %arg2[%c6, %c0_9] : memref<27x512xf32, #tpu.memory_space<vmem>>, vector<1x512xf32>
    %34 = vector.broadcast %33 : vector<1x512xf32> to vector<4x512xf32>
    %35 = arith.mulf %32, %34 : vector<4x512xf32>
    %36 = arith.truncf %35 : vector<4x512xf32> to vector<4x512xbf16>
    %c56_i32 = arith.constant 56 : i32
    %37 = tpu.dynamic_rotate %1 by %c56_i32 dim 1 : vector<4x512xf32>, i32 -> vector<4x512xf32>
    %c7 = arith.constant 7 : index
    %c0_10 = arith.constant 0 : index
    %38 = vector.load %arg2[%c7, %c0_10] : memref<27x512xf32, #tpu.memory_space<vmem>>, vector<1x512xf32>
    %39 = vector.broadcast %38 : vector<1x512xf32> to vector<4x512xf32>
    %40 = arith.mulf %37, %39 : vector<4x512xf32>
    %41 = arith.truncf %40 : vector<4x512xf32> to vector<4x512xbf16>
    %c55_i32 = arith.constant 55 : i32
    %42 = tpu.dynamic_rotate %1 by %c55_i32 dim 1 : vector<4x512xf32>, i32 -> vector<4x512xf32>
    %c8 = arith.constant 8 : index
    %c0_11 = arith.constant 0 : index
    %43 = vector.load %arg2[%c8, %c0_11] : memref<27x512xf32, #tpu.memory_space<vmem>>, vector<1x512xf32>
    %44 = vector.broadcast %43 : vector<1x512xf32> to vector<4x512xf32>
    %45 = arith.mulf %42, %44 : vector<4x512xf32>
    %46 = arith.truncf %45 : vector<4x512xf32> to vector<4x512xbf16>
    %c9_i32 = arith.constant 9 : i32
    %47 = tpu.dynamic_rotate %1 by %c9_i32 dim 1 : vector<4x512xf32>, i32 -> vector<4x512xf32>
    %c9 = arith.constant 9 : index
    %c0_12 = arith.constant 0 : index
    %48 = vector.load %arg2[%c9, %c0_12] : memref<27x512xf32, #tpu.memory_space<vmem>>, vector<1x512xf32>
    %49 = vector.broadcast %48 : vector<1x512xf32> to vector<4x512xf32>
    %50 = arith.mulf %47, %49 : vector<4x512xf32>
    %51 = arith.truncf %50 : vector<4x512xf32> to vector<4x512xbf16>
    %c8_i32 = arith.constant 8 : i32
    %52 = tpu.dynamic_rotate %1 by %c8_i32 dim 1 : vector<4x512xf32>, i32 -> vector<4x512xf32>
    %c10 = arith.constant 10 : index
    %c0_13 = arith.constant 0 : index
    %53 = vector.load %arg2[%c10, %c0_13] : memref<27x512xf32, #tpu.memory_space<vmem>>, vector<1x512xf32>
    %54 = vector.broadcast %53 : vector<1x512xf32> to vector<4x512xf32>
    %55 = arith.mulf %52, %54 : vector<4x512xf32>
    %56 = arith.truncf %55 : vector<4x512xf32> to vector<4x512xbf16>
    %c7_i32 = arith.constant 7 : i32
    %57 = tpu.dynamic_rotate %1 by %c7_i32 dim 1 : vector<4x512xf32>, i32 -> vector<4x512xf32>
    %c11 = arith.constant 11 : index
    %c0_14 = arith.constant 0 : index
    %58 = vector.load %arg2[%c11, %c0_14] : memref<27x512xf32, #tpu.memory_space<vmem>>, vector<1x512xf32>
    %59 = vector.broadcast %58 : vector<1x512xf32> to vector<4x512xf32>
    %60 = arith.mulf %57, %59 : vector<4x512xf32>
    %61 = arith.truncf %60 : vector<4x512xf32> to vector<4x512xbf16>
    %c1_i32 = arith.constant 1 : i32
    %62 = tpu.dynamic_rotate %1 by %c1_i32 dim 1 : vector<4x512xf32>, i32 -> vector<4x512xf32>
    %c12 = arith.constant 12 : index
    %c0_15 = arith.constant 0 : index
    %63 = vector.load %arg2[%c12, %c0_15] : memref<27x512xf32, #tpu.memory_space<vmem>>, vector<1x512xf32>
    %64 = vector.broadcast %63 : vector<1x512xf32> to vector<4x512xf32>
    %65 = arith.mulf %62, %64 : vector<4x512xf32>
    %66 = arith.truncf %65 : vector<4x512xf32> to vector<4x512xbf16>
    %67 = arith.truncf %1 : vector<4x512xf32> to vector<4x512xbf16>
    %c511_i32 = arith.constant 511 : i32
    %68 = tpu.dynamic_rotate %1 by %c511_i32 dim 1 : vector<4x512xf32>, i32 -> vector<4x512xf32>
    %c14 = arith.constant 14 : index
    %c0_16 = arith.constant 0 : index
    %69 = vector.load %arg2[%c14, %c0_16] : memref<27x512xf32, #tpu.memory_space<vmem>>, vector<1x512xf32>
    %70 = vector.broadcast %69 : vector<1x512xf32> to vector<4x512xf32>
    %71 = arith.mulf %68, %70 : vector<4x512xf32>
    %72 = arith.truncf %71 : vector<4x512xf32> to vector<4x512xbf16>
    %c505_i32 = arith.constant 505 : i32
    %73 = tpu.dynamic_rotate %1 by %c505_i32 dim 1 : vector<4x512xf32>, i32 -> vector<4x512xf32>
    %c15 = arith.constant 15 : index
    %c0_17 = arith.constant 0 : index
    %74 = vector.load %arg2[%c15, %c0_17] : memref<27x512xf32, #tpu.memory_space<vmem>>, vector<1x512xf32>
    %75 = vector.broadcast %74 : vector<1x512xf32> to vector<4x512xf32>
    %76 = arith.mulf %73, %75 : vector<4x512xf32>
    %77 = arith.truncf %76 : vector<4x512xf32> to vector<4x512xbf16>
    %c504_i32 = arith.constant 504 : i32
    %78 = tpu.dynamic_rotate %1 by %c504_i32 dim 1 : vector<4x512xf32>, i32 -> vector<4x512xf32>
    %c16 = arith.constant 16 : index
    %c0_18 = arith.constant 0 : index
    %79 = vector.load %arg2[%c16, %c0_18] : memref<27x512xf32, #tpu.memory_space<vmem>>, vector<1x512xf32>
    %80 = vector.broadcast %79 : vector<1x512xf32> to vector<4x512xf32>
    %81 = arith.mulf %78, %80 : vector<4x512xf32>
    %82 = arith.truncf %81 : vector<4x512xf32> to vector<4x512xbf16>
    %c503_i32 = arith.constant 503 : i32
    %83 = tpu.dynamic_rotate %1 by %c503_i32 dim 1 : vector<4x512xf32>, i32 -> vector<4x512xf32>
    %c17 = arith.constant 17 : index
    %c0_19 = arith.constant 0 : index
    %84 = vector.load %arg2[%c17, %c0_19] : memref<27x512xf32, #tpu.memory_space<vmem>>, vector<1x512xf32>
    %85 = vector.broadcast %84 : vector<1x512xf32> to vector<4x512xf32>
    %86 = arith.mulf %83, %85 : vector<4x512xf32>
    %87 = arith.truncf %86 : vector<4x512xf32> to vector<4x512xbf16>
    %c457_i32 = arith.constant 457 : i32
    %88 = tpu.dynamic_rotate %1 by %c457_i32 dim 1 : vector<4x512xf32>, i32 -> vector<4x512xf32>
    %c18 = arith.constant 18 : index
    %c0_20 = arith.constant 0 : index
    %89 = vector.load %arg2[%c18, %c0_20] : memref<27x512xf32, #tpu.memory_space<vmem>>, vector<1x512xf32>
    %90 = vector.broadcast %89 : vector<1x512xf32> to vector<4x512xf32>
    %91 = arith.mulf %88, %90 : vector<4x512xf32>
    %92 = arith.truncf %91 : vector<4x512xf32> to vector<4x512xbf16>
    %c456_i32 = arith.constant 456 : i32
    %93 = tpu.dynamic_rotate %1 by %c456_i32 dim 1 : vector<4x512xf32>, i32 -> vector<4x512xf32>
    %c19 = arith.constant 19 : index
    %c0_21 = arith.constant 0 : index
    %94 = vector.load %arg2[%c19, %c0_21] : memref<27x512xf32, #tpu.memory_space<vmem>>, vector<1x512xf32>
    %95 = vector.broadcast %94 : vector<1x512xf32> to vector<4x512xf32>
    %96 = arith.mulf %93, %95 : vector<4x512xf32>
    %97 = arith.truncf %96 : vector<4x512xf32> to vector<4x512xbf16>
    %c455_i32 = arith.constant 455 : i32
    %98 = tpu.dynamic_rotate %1 by %c455_i32 dim 1 : vector<4x512xf32>, i32 -> vector<4x512xf32>
    %c20 = arith.constant 20 : index
    %c0_22 = arith.constant 0 : index
    %99 = vector.load %arg2[%c20, %c0_22] : memref<27x512xf32, #tpu.memory_space<vmem>>, vector<1x512xf32>
    %100 = vector.broadcast %99 : vector<1x512xf32> to vector<4x512xf32>
    %101 = arith.mulf %98, %100 : vector<4x512xf32>
    %102 = arith.truncf %101 : vector<4x512xf32> to vector<4x512xbf16>
    %c449_i32 = arith.constant 449 : i32
    %103 = tpu.dynamic_rotate %1 by %c449_i32 dim 1 : vector<4x512xf32>, i32 -> vector<4x512xf32>
    %c21 = arith.constant 21 : index
    %c0_23 = arith.constant 0 : index
    %104 = vector.load %arg2[%c21, %c0_23] : memref<27x512xf32, #tpu.memory_space<vmem>>, vector<1x512xf32>
    %105 = vector.broadcast %104 : vector<1x512xf32> to vector<4x512xf32>
    %106 = arith.mulf %103, %105 : vector<4x512xf32>
    %107 = arith.truncf %106 : vector<4x512xf32> to vector<4x512xbf16>
    %c448_i32 = arith.constant 448 : i32
    %108 = tpu.dynamic_rotate %1 by %c448_i32 dim 1 : vector<4x512xf32>, i32 -> vector<4x512xf32>
    %c22 = arith.constant 22 : index
    %c0_24 = arith.constant 0 : index
    %109 = vector.load %arg2[%c22, %c0_24] : memref<27x512xf32, #tpu.memory_space<vmem>>, vector<1x512xf32>
    %110 = vector.broadcast %109 : vector<1x512xf32> to vector<4x512xf32>
    %111 = arith.mulf %108, %110 : vector<4x512xf32>
    %112 = arith.truncf %111 : vector<4x512xf32> to vector<4x512xbf16>
    %c447_i32 = arith.constant 447 : i32
    %113 = tpu.dynamic_rotate %1 by %c447_i32 dim 1 : vector<4x512xf32>, i32 -> vector<4x512xf32>
    %c23 = arith.constant 23 : index
    %c0_25 = arith.constant 0 : index
    %114 = vector.load %arg2[%c23, %c0_25] : memref<27x512xf32, #tpu.memory_space<vmem>>, vector<1x512xf32>
    %115 = vector.broadcast %114 : vector<1x512xf32> to vector<4x512xf32>
    %116 = arith.mulf %113, %115 : vector<4x512xf32>
    %117 = arith.truncf %116 : vector<4x512xf32> to vector<4x512xbf16>
    %c441_i32 = arith.constant 441 : i32
    %118 = tpu.dynamic_rotate %1 by %c441_i32 dim 1 : vector<4x512xf32>, i32 -> vector<4x512xf32>
    %c24 = arith.constant 24 : index
    %c0_26 = arith.constant 0 : index
    %119 = vector.load %arg2[%c24, %c0_26] : memref<27x512xf32, #tpu.memory_space<vmem>>, vector<1x512xf32>
    %120 = vector.broadcast %119 : vector<1x512xf32> to vector<4x512xf32>
    %121 = arith.mulf %118, %120 : vector<4x512xf32>
    %122 = arith.truncf %121 : vector<4x512xf32> to vector<4x512xbf16>
    %c440_i32 = arith.constant 440 : i32
    %123 = tpu.dynamic_rotate %1 by %c440_i32 dim 1 : vector<4x512xf32>, i32 -> vector<4x512xf32>
    %c25 = arith.constant 25 : index
    %c0_27 = arith.constant 0 : index
    %124 = vector.load %arg2[%c25, %c0_27] : memref<27x512xf32, #tpu.memory_space<vmem>>, vector<1x512xf32>
    %125 = vector.broadcast %124 : vector<1x512xf32> to vector<4x512xf32>
    %126 = arith.mulf %123, %125 : vector<4x512xf32>
    %127 = arith.truncf %126 : vector<4x512xf32> to vector<4x512xbf16>
    %c439_i32 = arith.constant 439 : i32
    %128 = tpu.dynamic_rotate %1 by %c439_i32 dim 1 : vector<4x512xf32>, i32 -> vector<4x512xf32>
    %c26 = arith.constant 26 : index
    %c0_28 = arith.constant 0 : index
    %129 = vector.load %arg2[%c26, %c0_28] : memref<27x512xf32, #tpu.memory_space<vmem>>, vector<1x512xf32>
    %130 = vector.broadcast %129 : vector<1x512xf32> to vector<4x512xf32>
    %131 = arith.mulf %128, %130 : vector<4x512xf32>
    %132 = arith.truncf %131 : vector<4x512xf32> to vector<4x512xbf16>
    %133 = tpu.concatenate %6, %11, %16, %21, %26, %31, %36, %41, %46, %51, %56, %61, %66, %67, %72, %77 in 0 : vector<4x512xbf16>, vector<4x512xbf16>, vector<4x512xbf16>, vector<4x512xbf16>, vector<4x512xbf16>, vector<4x512xbf16>, vector<4x512xbf16>, vector<4x512xbf16>, vector<4x512xbf16>, vector<4x512xbf16>, vector<4x512xbf16>, vector<4x512xbf16>, vector<4x512xbf16>, vector<4x512xbf16>, vector<4x512xbf16>, vector<4x512xbf16> -> vector<64x512xbf16>
    %134 = tpu.concatenate %82, %87, %92, %97, %102, %107, %112, %117, %122, %127, %132 in 0 : vector<4x512xbf16>, vector<4x512xbf16>, vector<4x512xbf16>, vector<4x512xbf16>, vector<4x512xbf16>, vector<4x512xbf16>, vector<4x512xbf16>, vector<4x512xbf16>, vector<4x512xbf16>, vector<4x512xbf16>, vector<4x512xbf16> -> vector<44x512xbf16>
    %135 = tpu.concatenate %133, %134 in 0 : vector<64x512xbf16>, vector<44x512xbf16> -> vector<108x512xbf16>
    %c0_29 = arith.constant 0 : index
    %c0_30 = arith.constant 0 : index
    %136 = vector.load %arg3[%c0_29, %c0_30] : memref<4x108xbf16, #tpu.memory_space<vmem>>, vector<4x108xbf16>
    %cst = arith.constant dense<0.000000e+00> : vector<4x512xf32>
    %137 = tpu.matmul %136, %135, %cst {dimension_numbers = #tpu.dot_dimension_numbers<[1], [0], [0], [1], [0, 0, 1, 1], [], []>} : vector<4x108xbf16>, vector<108x512xbf16>, vector<4x512xf32> -> vector<4x512xf32>
    %cst_31 = arith.constant dense<0.000000e+00> : vector<4xf32>
    %138 = vector.multi_reduction <add>, %137, %cst_31 [1] : vector<4x512xf32> to vector<4xf32>
    %139 = vector.shape_cast %138 : vector<4xf32> to vector<4x1xf32>
    %140 = arith.mulf %137, %137 : vector<4x512xf32>
    %cst_32 = arith.constant dense<0.000000e+00> : vector<4xf32>
    %141 = vector.multi_reduction <add>, %140, %cst_32 [1] : vector<4x512xf32> to vector<4xf32>
    %142 = vector.shape_cast %141 : vector<4xf32> to vector<4x1xf32>
    %cst_33 = arith.constant 0.001953125 : f32
    %143 = vector.broadcast %cst_33 : f32 to vector<4x1xf32>
    %144 = arith.mulf %139, %143 : vector<4x1xf32>
    %cst_34 = arith.constant 0.001953125 : f32
    %145 = vector.broadcast %cst_34 : f32 to vector<4x1xf32>
    %146 = arith.mulf %142, %145 : vector<4x1xf32>
    %147 = arith.mulf %144, %144 : vector<4x1xf32>
    %148 = arith.subf %146, %147 : vector<4x1xf32>
    %cst_35 = arith.constant 0.000000e+00 : f32
    %149 = vector.broadcast %cst_35 : f32 to vector<4x1xf32>
    %150 = arith.maximumf %148, %149 : vector<4x1xf32>
    %151 = vector.broadcast %144 : vector<4x1xf32> to vector<4x512xf32>
    %152 = arith.subf %137, %151 : vector<4x512xf32>
    %cst_36 = arith.constant 9.99999974E-6 : f32
    %153 = vector.broadcast %cst_36 : f32 to vector<4x1xf32>
    %154 = arith.addf %150, %153 : vector<4x1xf32>
    %155 = math.rsqrt %154 : vector<4x1xf32>
    %156 = vector.broadcast %155 : vector<4x1xf32> to vector<4x512xf32>
    %157 = arith.mulf %152, %156 : vector<4x512xf32>
    %cst_37 = arith.constant 0.000000e+00 : f32
    %158 = vector.broadcast %cst_37 : f32 to vector<4x512xf32>
    %159 = arith.maximumf %157, %158 : vector<4x512xf32>
    %c73_i32_38 = arith.constant 73 : i32
    %160 = tpu.dynamic_rotate %159 by %c73_i32_38 dim 1 : vector<4x512xf32>, i32 -> vector<4x512xf32>
    %c0_39 = arith.constant 0 : index
    %c0_40 = arith.constant 0 : index
    %161 = vector.load %arg2[%c0_39, %c0_40] : memref<27x512xf32, #tpu.memory_space<vmem>>, vector<1x512xf32>
    %162 = vector.broadcast %161 : vector<1x512xf32> to vector<4x512xf32>
    %163 = arith.mulf %160, %162 : vector<4x512xf32>
    %164 = arith.truncf %163 : vector<4x512xf32> to vector<4x512xbf16>
    %c72_i32_41 = arith.constant 72 : i32
    %165 = tpu.dynamic_rotate %159 by %c72_i32_41 dim 1 : vector<4x512xf32>, i32 -> vector<4x512xf32>
    %c1_42 = arith.constant 1 : index
    %c0_43 = arith.constant 0 : index
    %166 = vector.load %arg2[%c1_42, %c0_43] : memref<27x512xf32, #tpu.memory_space<vmem>>, vector<1x512xf32>
    %167 = vector.broadcast %166 : vector<1x512xf32> to vector<4x512xf32>
    %168 = arith.mulf %165, %167 : vector<4x512xf32>
    %169 = arith.truncf %168 : vector<4x512xf32> to vector<4x512xbf16>
    %c71_i32_44 = arith.constant 71 : i32
    %170 = tpu.dynamic_rotate %159 by %c71_i32_44 dim 1 : vector<4x512xf32>, i32 -> vector<4x512xf32>
    %c2_45 = arith.constant 2 : index
    %c0_46 = arith.constant 0 : index
    %171 = vector.load %arg2[%c2_45, %c0_46] : memref<27x512xf32, #tpu.memory_space<vmem>>, vector<1x512xf32>
    %172 = vector.broadcast %171 : vector<1x512xf32> to vector<4x512xf32>
    %173 = arith.mulf %170, %172 : vector<4x512xf32>
    %174 = arith.truncf %173 : vector<4x512xf32> to vector<4x512xbf16>
    %c65_i32_47 = arith.constant 65 : i32
    %175 = tpu.dynamic_rotate %159 by %c65_i32_47 dim 1 : vector<4x512xf32>, i32 -> vector<4x512xf32>
    %c3_48 = arith.constant 3 : index
    %c0_49 = arith.constant 0 : index
    %176 = vector.load %arg2[%c3_48, %c0_49] : memref<27x512xf32, #tpu.memory_space<vmem>>, vector<1x512xf32>
    %177 = vector.broadcast %176 : vector<1x512xf32> to vector<4x512xf32>
    %178 = arith.mulf %175, %177 : vector<4x512xf32>
    %179 = arith.truncf %178 : vector<4x512xf32> to vector<4x512xbf16>
    %c64_i32_50 = arith.constant 64 : i32
    %180 = tpu.dynamic_rotate %159 by %c64_i32_50 dim 1 : vector<4x512xf32>, i32 -> vector<4x512xf32>
    %c4_51 = arith.constant 4 : index
    %c0_52 = arith.constant 0 : index
    %181 = vector.load %arg2[%c4_51, %c0_52] : memref<27x512xf32, #tpu.memory_space<vmem>>, vector<1x512xf32>
    %182 = vector.broadcast %181 : vector<1x512xf32> to vector<4x512xf32>
    %183 = arith.mulf %180, %182 : vector<4x512xf32>
    %184 = arith.truncf %183 : vector<4x512xf32> to vector<4x512xbf16>
    %c63_i32_53 = arith.constant 63 : i32
    %185 = tpu.dynamic_rotate %159 by %c63_i32_53 dim 1 : vector<4x512xf32>, i32 -> vector<4x512xf32>
    %c5_54 = arith.constant 5 : index
    %c0_55 = arith.constant 0 : index
    %186 = vector.load %arg2[%c5_54, %c0_55] : memref<27x512xf32, #tpu.memory_space<vmem>>, vector<1x512xf32>
    %187 = vector.broadcast %186 : vector<1x512xf32> to vector<4x512xf32>
    %188 = arith.mulf %185, %187 : vector<4x512xf32>
    %189 = arith.truncf %188 : vector<4x512xf32> to vector<4x512xbf16>
    %c57_i32_56 = arith.constant 57 : i32
    %190 = tpu.dynamic_rotate %159 by %c57_i32_56 dim 1 : vector<4x512xf32>, i32 -> vector<4x512xf32>
    %c6_57 = arith.constant 6 : index
    %c0_58 = arith.constant 0 : index
    %191 = vector.load %arg2[%c6_57, %c0_58] : memref<27x512xf32, #tpu.memory_space<vmem>>, vector<1x512xf32>
    %192 = vector.broadcast %191 : vector<1x512xf32> to vector<4x512xf32>
    %193 = arith.mulf %190, %192 : vector<4x512xf32>
    %194 = arith.truncf %193 : vector<4x512xf32> to vector<4x512xbf16>
    %c56_i32_59 = arith.constant 56 : i32
    %195 = tpu.dynamic_rotate %159 by %c56_i32_59 dim 1 : vector<4x512xf32>, i32 -> vector<4x512xf32>
    %c7_60 = arith.constant 7 : index
    %c0_61 = arith.constant 0 : index
    %196 = vector.load %arg2[%c7_60, %c0_61] : memref<27x512xf32, #tpu.memory_space<vmem>>, vector<1x512xf32>
    %197 = vector.broadcast %196 : vector<1x512xf32> to vector<4x512xf32>
    %198 = arith.mulf %195, %197 : vector<4x512xf32>
    %199 = arith.truncf %198 : vector<4x512xf32> to vector<4x512xbf16>
    %c55_i32_62 = arith.constant 55 : i32
    %200 = tpu.dynamic_rotate %159 by %c55_i32_62 dim 1 : vector<4x512xf32>, i32 -> vector<4x512xf32>
    %c8_63 = arith.constant 8 : index
    %c0_64 = arith.constant 0 : index
    %201 = vector.load %arg2[%c8_63, %c0_64] : memref<27x512xf32, #tpu.memory_space<vmem>>, vector<1x512xf32>
    %202 = vector.broadcast %201 : vector<1x512xf32> to vector<4x512xf32>
    %203 = arith.mulf %200, %202 : vector<4x512xf32>
    %204 = arith.truncf %203 : vector<4x512xf32> to vector<4x512xbf16>
    %c9_i32_65 = arith.constant 9 : i32
    %205 = tpu.dynamic_rotate %159 by %c9_i32_65 dim 1 : vector<4x512xf32>, i32 -> vector<4x512xf32>
    %c9_66 = arith.constant 9 : index
    %c0_67 = arith.constant 0 : index
    %206 = vector.load %arg2[%c9_66, %c0_67] : memref<27x512xf32, #tpu.memory_space<vmem>>, vector<1x512xf32>
    %207 = vector.broadcast %206 : vector<1x512xf32> to vector<4x512xf32>
    %208 = arith.mulf %205, %207 : vector<4x512xf32>
    %209 = arith.truncf %208 : vector<4x512xf32> to vector<4x512xbf16>
    %c8_i32_68 = arith.constant 8 : i32
    %210 = tpu.dynamic_rotate %159 by %c8_i32_68 dim 1 : vector<4x512xf32>, i32 -> vector<4x512xf32>
    %c10_69 = arith.constant 10 : index
    %c0_70 = arith.constant 0 : index
    %211 = vector.load %arg2[%c10_69, %c0_70] : memref<27x512xf32, #tpu.memory_space<vmem>>, vector<1x512xf32>
    %212 = vector.broadcast %211 : vector<1x512xf32> to vector<4x512xf32>
    %213 = arith.mulf %210, %212 : vector<4x512xf32>
    %214 = arith.truncf %213 : vector<4x512xf32> to vector<4x512xbf16>
    %c7_i32_71 = arith.constant 7 : i32
    %215 = tpu.dynamic_rotate %159 by %c7_i32_71 dim 1 : vector<4x512xf32>, i32 -> vector<4x512xf32>
    %c11_72 = arith.constant 11 : index
    %c0_73 = arith.constant 0 : index
    %216 = vector.load %arg2[%c11_72, %c0_73] : memref<27x512xf32, #tpu.memory_space<vmem>>, vector<1x512xf32>
    %217 = vector.broadcast %216 : vector<1x512xf32> to vector<4x512xf32>
    %218 = arith.mulf %215, %217 : vector<4x512xf32>
    %219 = arith.truncf %218 : vector<4x512xf32> to vector<4x512xbf16>
    %c1_i32_74 = arith.constant 1 : i32
    %220 = tpu.dynamic_rotate %159 by %c1_i32_74 dim 1 : vector<4x512xf32>, i32 -> vector<4x512xf32>
    %c12_75 = arith.constant 12 : index
    %c0_76 = arith.constant 0 : index
    %221 = vector.load %arg2[%c12_75, %c0_76] : memref<27x512xf32, #tpu.memory_space<vmem>>, vector<1x512xf32>
    %222 = vector.broadcast %221 : vector<1x512xf32> to vector<4x512xf32>
    %223 = arith.mulf %220, %222 : vector<4x512xf32>
    %224 = arith.truncf %223 : vector<4x512xf32> to vector<4x512xbf16>
    %225 = arith.truncf %159 : vector<4x512xf32> to vector<4x512xbf16>
    %c511_i32_77 = arith.constant 511 : i32
    %226 = tpu.dynamic_rotate %159 by %c511_i32_77 dim 1 : vector<4x512xf32>, i32 -> vector<4x512xf32>
    %c14_78 = arith.constant 14 : index
    %c0_79 = arith.constant 0 : index
    %227 = vector.load %arg2[%c14_78, %c0_79] : memref<27x512xf32, #tpu.memory_space<vmem>>, vector<1x512xf32>
    %228 = vector.broadcast %227 : vector<1x512xf32> to vector<4x512xf32>
    %229 = arith.mulf %226, %228 : vector<4x512xf32>
    %230 = arith.truncf %229 : vector<4x512xf32> to vector<4x512xbf16>
    %c505_i32_80 = arith.constant 505 : i32
    %231 = tpu.dynamic_rotate %159 by %c505_i32_80 dim 1 : vector<4x512xf32>, i32 -> vector<4x512xf32>
    %c15_81 = arith.constant 15 : index
    %c0_82 = arith.constant 0 : index
    %232 = vector.load %arg2[%c15_81, %c0_82] : memref<27x512xf32, #tpu.memory_space<vmem>>, vector<1x512xf32>
    %233 = vector.broadcast %232 : vector<1x512xf32> to vector<4x512xf32>
    %234 = arith.mulf %231, %233 : vector<4x512xf32>
    %235 = arith.truncf %234 : vector<4x512xf32> to vector<4x512xbf16>
    %c504_i32_83 = arith.constant 504 : i32
    %236 = tpu.dynamic_rotate %159 by %c504_i32_83 dim 1 : vector<4x512xf32>, i32 -> vector<4x512xf32>
    %c16_84 = arith.constant 16 : index
    %c0_85 = arith.constant 0 : index
    %237 = vector.load %arg2[%c16_84, %c0_85] : memref<27x512xf32, #tpu.memory_space<vmem>>, vector<1x512xf32>
    %238 = vector.broadcast %237 : vector<1x512xf32> to vector<4x512xf32>
    %239 = arith.mulf %236, %238 : vector<4x512xf32>
    %240 = arith.truncf %239 : vector<4x512xf32> to vector<4x512xbf16>
    %c503_i32_86 = arith.constant 503 : i32
    %241 = tpu.dynamic_rotate %159 by %c503_i32_86 dim 1 : vector<4x512xf32>, i32 -> vector<4x512xf32>
    %c17_87 = arith.constant 17 : index
    %c0_88 = arith.constant 0 : index
    %242 = vector.load %arg2[%c17_87, %c0_88] : memref<27x512xf32, #tpu.memory_space<vmem>>, vector<1x512xf32>
    %243 = vector.broadcast %242 : vector<1x512xf32> to vector<4x512xf32>
    %244 = arith.mulf %241, %243 : vector<4x512xf32>
    %245 = arith.truncf %244 : vector<4x512xf32> to vector<4x512xbf16>
    %c457_i32_89 = arith.constant 457 : i32
    %246 = tpu.dynamic_rotate %159 by %c457_i32_89 dim 1 : vector<4x512xf32>, i32 -> vector<4x512xf32>
    %c18_90 = arith.constant 18 : index
    %c0_91 = arith.constant 0 : index
    %247 = vector.load %arg2[%c18_90, %c0_91] : memref<27x512xf32, #tpu.memory_space<vmem>>, vector<1x512xf32>
    %248 = vector.broadcast %247 : vector<1x512xf32> to vector<4x512xf32>
    %249 = arith.mulf %246, %248 : vector<4x512xf32>
    %250 = arith.truncf %249 : vector<4x512xf32> to vector<4x512xbf16>
    %c456_i32_92 = arith.constant 456 : i32
    %251 = tpu.dynamic_rotate %159 by %c456_i32_92 dim 1 : vector<4x512xf32>, i32 -> vector<4x512xf32>
    %c19_93 = arith.constant 19 : index
    %c0_94 = arith.constant 0 : index
    %252 = vector.load %arg2[%c19_93, %c0_94] : memref<27x512xf32, #tpu.memory_space<vmem>>, vector<1x512xf32>
    %253 = vector.broadcast %252 : vector<1x512xf32> to vector<4x512xf32>
    %254 = arith.mulf %251, %253 : vector<4x512xf32>
    %255 = arith.truncf %254 : vector<4x512xf32> to vector<4x512xbf16>
    %c455_i32_95 = arith.constant 455 : i32
    %256 = tpu.dynamic_rotate %159 by %c455_i32_95 dim 1 : vector<4x512xf32>, i32 -> vector<4x512xf32>
    %c20_96 = arith.constant 20 : index
    %c0_97 = arith.constant 0 : index
    %257 = vector.load %arg2[%c20_96, %c0_97] : memref<27x512xf32, #tpu.memory_space<vmem>>, vector<1x512xf32>
    %258 = vector.broadcast %257 : vector<1x512xf32> to vector<4x512xf32>
    %259 = arith.mulf %256, %258 : vector<4x512xf32>
    %260 = arith.truncf %259 : vector<4x512xf32> to vector<4x512xbf16>
    %c449_i32_98 = arith.constant 449 : i32
    %261 = tpu.dynamic_rotate %159 by %c449_i32_98 dim 1 : vector<4x512xf32>, i32 -> vector<4x512xf32>
    %c21_99 = arith.constant 21 : index
    %c0_100 = arith.constant 0 : index
    %262 = vector.load %arg2[%c21_99, %c0_100] : memref<27x512xf32, #tpu.memory_space<vmem>>, vector<1x512xf32>
    %263 = vector.broadcast %262 : vector<1x512xf32> to vector<4x512xf32>
    %264 = arith.mulf %261, %263 : vector<4x512xf32>
    %265 = arith.truncf %264 : vector<4x512xf32> to vector<4x512xbf16>
    %c448_i32_101 = arith.constant 448 : i32
    %266 = tpu.dynamic_rotate %159 by %c448_i32_101 dim 1 : vector<4x512xf32>, i32 -> vector<4x512xf32>
    %c22_102 = arith.constant 22 : index
    %c0_103 = arith.constant 0 : index
    %267 = vector.load %arg2[%c22_102, %c0_103] : memref<27x512xf32, #tpu.memory_space<vmem>>, vector<1x512xf32>
    %268 = vector.broadcast %267 : vector<1x512xf32> to vector<4x512xf32>
    %269 = arith.mulf %266, %268 : vector<4x512xf32>
    %270 = arith.truncf %269 : vector<4x512xf32> to vector<4x512xbf16>
    %c447_i32_104 = arith.constant 447 : i32
    %271 = tpu.dynamic_rotate %159 by %c447_i32_104 dim 1 : vector<4x512xf32>, i32 -> vector<4x512xf32>
    %c23_105 = arith.constant 23 : index
    %c0_106 = arith.constant 0 : index
    %272 = vector.load %arg2[%c23_105, %c0_106] : memref<27x512xf32, #tpu.memory_space<vmem>>, vector<1x512xf32>
    %273 = vector.broadcast %272 : vector<1x512xf32> to vector<4x512xf32>
    %274 = arith.mulf %271, %273 : vector<4x512xf32>
    %275 = arith.truncf %274 : vector<4x512xf32> to vector<4x512xbf16>
    %c441_i32_107 = arith.constant 441 : i32
    %276 = tpu.dynamic_rotate %159 by %c441_i32_107 dim 1 : vector<4x512xf32>, i32 -> vector<4x512xf32>
    %c24_108 = arith.constant 24 : index
    %c0_109 = arith.constant 0 : index
    %277 = vector.load %arg2[%c24_108, %c0_109] : memref<27x512xf32, #tpu.memory_space<vmem>>, vector<1x512xf32>
    %278 = vector.broadcast %277 : vector<1x512xf32> to vector<4x512xf32>
    %279 = arith.mulf %276, %278 : vector<4x512xf32>
    %280 = arith.truncf %279 : vector<4x512xf32> to vector<4x512xbf16>
    %c440_i32_110 = arith.constant 440 : i32
    %281 = tpu.dynamic_rotate %159 by %c440_i32_110 dim 1 : vector<4x512xf32>, i32 -> vector<4x512xf32>
    %c25_111 = arith.constant 25 : index
    %c0_112 = arith.constant 0 : index
    %282 = vector.load %arg2[%c25_111, %c0_112] : memref<27x512xf32, #tpu.memory_space<vmem>>, vector<1x512xf32>
    %283 = vector.broadcast %282 : vector<1x512xf32> to vector<4x512xf32>
    %284 = arith.mulf %281, %283 : vector<4x512xf32>
    %285 = arith.truncf %284 : vector<4x512xf32> to vector<4x512xbf16>
    %c439_i32_113 = arith.constant 439 : i32
    %286 = tpu.dynamic_rotate %159 by %c439_i32_113 dim 1 : vector<4x512xf32>, i32 -> vector<4x512xf32>
    %c26_114 = arith.constant 26 : index
    %c0_115 = arith.constant 0 : index
    %287 = vector.load %arg2[%c26_114, %c0_115] : memref<27x512xf32, #tpu.memory_space<vmem>>, vector<1x512xf32>
    %288 = vector.broadcast %287 : vector<1x512xf32> to vector<4x512xf32>
    %289 = arith.mulf %286, %288 : vector<4x512xf32>
    %290 = arith.truncf %289 : vector<4x512xf32> to vector<4x512xbf16>
    %291 = tpu.concatenate %164, %169, %174, %179, %184, %189, %194, %199, %204, %209, %214, %219, %224, %225, %230, %235 in 0 : vector<4x512xbf16>, vector<4x512xbf16>, vector<4x512xbf16>, vector<4x512xbf16>, vector<4x512xbf16>, vector<4x512xbf16>, vector<4x512xbf16>, vector<4x512xbf16>, vector<4x512xbf16>, vector<4x512xbf16>, vector<4x512xbf16>, vector<4x512xbf16>, vector<4x512xbf16>, vector<4x512xbf16>, vector<4x512xbf16>, vector<4x512xbf16> -> vector<64x512xbf16>
    %292 = tpu.concatenate %240, %245, %250, %255, %260, %265, %270, %275, %280, %285, %290 in 0 : vector<4x512xbf16>, vector<4x512xbf16>, vector<4x512xbf16>, vector<4x512xbf16>, vector<4x512xbf16>, vector<4x512xbf16>, vector<4x512xbf16>, vector<4x512xbf16>, vector<4x512xbf16>, vector<4x512xbf16>, vector<4x512xbf16> -> vector<44x512xbf16>
    %293 = tpu.concatenate %291, %292 in 0 : vector<64x512xbf16>, vector<44x512xbf16> -> vector<108x512xbf16>
    %c0_116 = arith.constant 0 : index
    %c0_117 = arith.constant 0 : index
    %294 = vector.load %arg4[%c0_116, %c0_117] : memref<4x108xbf16, #tpu.memory_space<vmem>>, vector<4x108xbf16>
    %cst_118 = arith.constant dense<0.000000e+00> : vector<4x512xf32>
    %295 = tpu.matmul %294, %293, %cst_118 {dimension_numbers = #tpu.dot_dimension_numbers<[1], [0], [0], [1], [0, 0, 1, 1], [], []>} : vector<4x108xbf16>, vector<108x512xbf16>, vector<4x512xf32> -> vector<4x512xf32>
    %cst_119 = arith.constant dense<0.000000e+00> : vector<4xf32>
    %296 = vector.multi_reduction <add>, %295, %cst_119 [1] : vector<4x512xf32> to vector<4xf32>
    %297 = vector.shape_cast %296 : vector<4xf32> to vector<4x1xf32>
    %298 = arith.mulf %295, %295 : vector<4x512xf32>
    %cst_120 = arith.constant dense<0.000000e+00> : vector<4xf32>
    %299 = vector.multi_reduction <add>, %298, %cst_120 [1] : vector<4x512xf32> to vector<4xf32>
    %300 = vector.shape_cast %299 : vector<4xf32> to vector<4x1xf32>
    %cst_121 = arith.constant 0.001953125 : f32
    %301 = vector.broadcast %cst_121 : f32 to vector<4x1xf32>
    %302 = arith.mulf %297, %301 : vector<4x1xf32>
    %cst_122 = arith.constant 0.001953125 : f32
    %303 = vector.broadcast %cst_122 : f32 to vector<4x1xf32>
    %304 = arith.mulf %300, %303 : vector<4x1xf32>
    %305 = arith.mulf %302, %302 : vector<4x1xf32>
    %306 = arith.subf %304, %305 : vector<4x1xf32>
    %cst_123 = arith.constant 0.000000e+00 : f32
    %307 = vector.broadcast %cst_123 : f32 to vector<4x1xf32>
    %308 = arith.maximumf %306, %307 : vector<4x1xf32>
    %309 = vector.broadcast %302 : vector<4x1xf32> to vector<4x512xf32>
    %310 = arith.subf %295, %309 : vector<4x512xf32>
    %cst_124 = arith.constant 9.99999974E-6 : f32
    %311 = vector.broadcast %cst_124 : f32 to vector<4x1xf32>
    %312 = arith.addf %308, %311 : vector<4x1xf32>
    %313 = math.rsqrt %312 : vector<4x1xf32>
    %314 = vector.broadcast %313 : vector<4x1xf32> to vector<4x512xf32>
    %315 = arith.mulf %310, %314 : vector<4x512xf32>
    %316 = arith.addf %1, %315 : vector<4x512xf32>
    %c0_125 = arith.constant 0 : index
    %c0_126 = arith.constant 0 : index
    %c0_127 = arith.constant 0 : index
    %317 = vector.load %arg5[%c0_125, %c0_126, %c0_127] : memref<1x4x512xf32, #tpu.memory_space<vmem>>, vector<1x4x512xf32>
    %318 = vector.shape_cast %317 : vector<1x4x512xf32> to vector<4x512xf32>
    %319 = vector.shape_cast %316 : vector<4x512xf32> to vector<1x4x512xf32>
    tpu.vector_store %arg5[%c0_125, %c0_126, %c0_127], %319 {strides = array<i32>} : memref<1x4x512xf32, #tpu.memory_space<vmem>>, vector<1x4x512xf32>,
    return
  }
  func.func @transform_0(%arg0: i32) -> (i32, i32, i32) {
    %c0_i32 = arith.constant 0 : i32
    %c0_i32_0 = arith.constant 0 : i32
    %c0_i32_1 = arith.constant 0 : i32
    return %arg0, %c0_i32, %c0_i32_0 : i32, i32, i32
  }
  func.func @transform_1(%arg0: i32) -> (i32, i32) {
    %c0_i32 = arith.constant 0 : i32
    %c0_i32_0 = arith.constant 0 : i32
    %c0_i32_1 = arith.constant 0 : i32
    return %c0_i32, %c0_i32_0 : i32, i32
  }
  func.func @transform_2(%arg0: i32) -> (i32, i32) {
    %c0_i32 = arith.constant 0 : i32
    %c0_i32_0 = arith.constant 0 : i32
    %c0_i32_1 = arith.constant 0 : i32
    return %c0_i32, %c0_i32_0 : i32, i32
  }
  func.func @transform_3(%arg0: i32) -> (i32, i32) {
    %c0_i32 = arith.constant 0 : i32
    %c0_i32_0 = arith.constant 0 : i32
    %c0_i32_1 = arith.constant 0 : i32
    return %c0_i32, %c0_i32_0 : i32, i32
  }
  func.func @transform_4(%arg0: i32) -> (i32, i32, i32) {
    %c0_i32 = arith.constant 0 : i32
    %c0_i32_0 = arith.constant 0 : i32
    %c0_i32_1 = arith.constant 0 : i32
    return %arg0, %c0_i32, %c0_i32_0 : i32, i32, i32
  }
}

</mosaic_0001>

<llo_original>
// kernel: tpu_custom_call.1
$region0: #{tpu_custom_call.1}
  #allocation0 [shape = 'u32[]', space=smem, size = 0x4, offset = 0x4, fixed_abs, tag = 'smem constant byte address 0x4 - core index']
  #allocation1 [shape = 'u32[144,128]{1,0:T(1,128)}', space=vmem, size = 0x12000, scoped, tag = 'internal scratch']
  %s0 = inlined_call_operand.hbm [shape: f32[2,4,512], index: 0, kind: input, shape index: {}]
  %s1 = inlined_call_operand.hbm [shape: f32[27,512], index: 1, kind: input, shape index: {}]
  %s2 = inlined_call_operand.vmem [shape: bf16[4,108], index: 2, kind: input, shape index: {}]
  %s3 = inlined_call_operand.vmem [shape: bf16[4,108], index: 3, kind: input, shape index: {}]
  %s4 = inlined_call_operand.hbm [shape: f32[2,4,512], index: 4, kind: output, shape index: {}]
  %s5 = sld [smem:[#allocation0]]
  $region57: #{tpu_custom_call.1} parent=0
    _
  %s7 = ssub.s32 1, %s5
  %s8 = scalar_select 0, %s7, %s5
  $region1: #{tpu_custom_call.1} parent=0
    #allocation2 [shape = 'u8[16384]{0}', space=vmem, size = 0x4000, scoped, tag = 'input window, operand 0']
    #allocation3 [shape = 's32[2]{0}', space=sflag, size = 0x8, scoped, tag = 'scoped memory for tpu_custom_call.1']
    #allocation4 [shape = 's32[2]{0}', space=sflag, size = 0x8, scoped, tag = 'scoped memory for tpu_custom_call.1']
    #allocation5 [shape = 'u8[65536]{0}', space=vmem, size = 0x10000, scoped, tag = 'input window, operand 1, single buffered']
    #allocation6 [shape = 's32[1]{0}', space=sflag, size = 0x4, scoped, tag = 'scoped memory for tpu_custom_call.1']
    #allocation7 [shape = 'u8[16384]{0}', space=vmem, size = 0x4000, scoped, tag = 'output window, operand 0']
    %9 = vsyncpa [#allocation3], 0
    %s10 = scalar_lea.sflag [#allocation3], 1
    %11 = vsyncpa %s10, 0
    %12 = vsyncpa [#allocation6], 0
    %13 = vsyncpa [#allocation4], 0
    %s14 = scalar_lea.sflag [#allocation4], 1
    %15 = vsyncpa %s14, 0
    loop: start=0, step=1, limit=4
    $region2: #{tpu_custom_call.1} parent=1 // loop_pre_header
      _
    $region3: #{tpu_custom_call.1} parent=1 // loop_header
      %s17 = sphi 0, %s21
      %p18 = scmp.ge.s32.totalorder %s17, 4
      %s27 = sphi 0, %s29
      %s30 = sphi 0, %s27
      %s31 = sphi 0, %s30
      %s47 = sphi 0, %s31
      %s51 = sphi 0, %s51
      %s53 = sphi 0, %s51
      %s54 = sphi 0, %s53
      %s68 = sphi 0, %s54
      %s72 = sphi 0, %s72
      %s74 = sphi 0, %s72
      %s75 = sphi 0, %s74
      %s89 = sphi 0, %s75
      %s93 = sphi 0, %s93
      %s95 = sphi 0, %s93
      %s96 = sphi 0, %s95
      %s110 = sphi 0, %s96
      %s116 = sphi 0, %s118
      %s119 = sphi 0, %s116
      %s120 = sphi 0, %s119
      %s136 = sphi 0, %s120
    $region4: #{tpu_custom_call.1} parent=1 // loop_header_branch
      %20 = sbr.rel (%p18) target = $region8
    $region5: #{tpu_custom_call.1} parent=1 // loop_body
      %s22 = ssub.s32 %s17, 1
      %s23 = ssub.s32 %s17, 2
      %s24 = sadd.s32 %s17, 1
      %s25 = ssub.s32 %s17, %s24
      %p26 = scmp.eq.s32.totalorder %s25, 0
      %s28 = sadd.s32 %s27, 1
      %s29 = scalar_select %p26, %s27, %s28
      %p32 = pneg %p26
      %p33 = scmp.eq.s32.totalorder %s17, 1
      %p34 = por %p32, %p33
      %p35 = scmp.ne.s32.totalorder %s27, %s30
      %p36 = scmp.eq.s32.totalorder %s17, 0
      %p37 = por %p35, %p36
      %p38 = scmp.ne.s32.totalorder %s27, %s30
      %p39 = scmp.eq.s32.totalorder %s22, 1
      %p40 = por %p38, %p39
      %p41 = scmp.ne.s32.totalorder %s30, %s31
      %p42 = scmp.eq.s32.totalorder %s22, 0
      %p43 = por %p41, %p42
      %p44 = scmp.ne.s32.totalorder %s30, %s31
      %p45 = scmp.eq.s32.totalorder %s23, 1
      %p46 = por %p44, %p45
      %p48 = scmp.ne.s32.totalorder %s31, %s47
      %p49 = scmp.eq.s32.totalorder %s23, 0
      %p50 = por %p48, %p49
      %s52 = sadd.s32 %s51, 1
      %p55 = scmp.eq.s32.totalorder %s17, 1
      %p56 = scmp.ne.s32.totalorder %s51, %s53
      %p57 = scmp.eq.s32.totalorder %s17, 0
      %p58 = por %p56, %p57
      %p59 = scmp.ne.s32.totalorder %s51, %s53
      %p60 = scmp.eq.s32.totalorder %s22, 1
      %p61 = por %p59, %p60
      %p62 = scmp.ne.s32.totalorder %s53, %s54
      %p63 = scmp.eq.s32.totalorder %s22, 0
      %p64 = por %p62, %p63
      %p65 = scmp.ne.s32.totalorder %s53, %s54
      %p66 = scmp.eq.s32.totalorder %s23, 1
      %p67 = por %p65, %p66
      %p69 = scmp.ne.s32.totalorder %s54, %s68
      %p70 = scmp.eq.s32.totalorder %s23, 0
      %p71 = por %p69, %p70
      %s73 = sadd.s32 %s72, 1
      %p76 = scmp.eq.s32.totalorder %s17, 1
      %p77 = scmp.ne.s32.totalorder %s72, %s74
      %p78 = scmp.eq.s32.totalorder %s17, 0
      %p79 = por %p77, %p78
      %p80 = scmp.ne.s32.totalorder %s72, %s74
      %p81 = scmp.eq.s32.totalorder %s22, 1
      %p82 = por %p80, %p81
      %p83 = scmp.ne.s32.totalorder %s74, %s75
      %p84 = scmp.eq.s32.totalorder %s22, 0
      %p85 = por %p83, %p84
      %p86 = scmp.ne.s32.totalorder %s74, %s75
      %p87 = scmp.eq.s32.totalorder %s23, 1
      %p88 = por %p86, %p87
      %p90 = scmp.ne.s32.totalorder %s75, %s89
      %p91 = scmp.eq.s32.totalorder %s23, 0
      %p92 = por %p90, %p91
      %s94 = sadd.s32 %s93, 1
      %p97 = scmp.eq.s32.totalorder %s17, 1
      %p98 = scmp.ne.s32.totalorder %s93, %s95
      %p99 = scmp.eq.s32.totalorder %s17, 0
      %p100 = por %p98, %p99
      %p101 = scmp.ne.s32.totalorder %s93, %s95
      %p102 = scmp.eq.s32.totalorder %s22, 1
      %p103 = por %p101, %p102
      %p104 = scmp.ne.s32.totalorder %s95, %s96
      %p105 = scmp.eq.s32.totalorder %s22, 0
      %p106 = por %p104, %p105
      %p107 = scmp.ne.s32.totalorder %s95, %s96
      %p108 = scmp.eq.s32.totalorder %s23, 1
      %p109 = por %p107, %p108
      %p111 = scmp.ne.s32.totalorder %s96, %s110
      %p112 = scmp.eq.s32.totalorder %s23, 0
      %p113 = por %p111, %p112
      %s114 = ssub.s32 %s17, %s24
      %p115 = scmp.eq.s32.totalorder %s114, 0
      %s117 = sadd.s32 %s116, 1
      %s118 = scalar_select %p115, %s116, %s117
      %p121 = pneg %p115
      %p122 = scmp.eq.s32.totalorder %s17, 1
      %p123 = por %p121, %p122
      %p124 = scmp.ne.s32.totalorder %s116, %s119
      %p125 = scmp.eq.s32.totalorder %s17, 0
      %p126 = por %p124, %p125
      %p127 = scmp.ne.s32.totalorder %s116, %s119
      %p128 = scmp.eq.s32.totalorder %s22, 1
      %p129 = por %p127, %p128
      %p130 = scmp.ne.s32.totalorder %s119, %s120
      %p131 = scmp.eq.s32.totalorder %s22, 0
      %p132 = por %p130, %p131
      %p133 = scmp.ne.s32.totalorder %s119, %s120
      %p134 = scmp.eq.s32.totalorder %s23, 1
      %p135 = por %p133, %p134
      %p137 = scmp.ne.s32.totalorder %s120, %s136
      %p138 = scmp.eq.s32.totalorder %s23, 0
      %p139 = por %p137, %p138
      %p140 = scmp.le.s32.totalorder 1, %s17
      %p141 = scmp.lt.s32.totalorder %s17, 3
      %p142 = pnand %p140, %p141
      %p143 = pneg %p142
      // Predicated region
      $region9: #{tpu_custom_call.1} parent=5 // pred_check
        _
      $region10: #{tpu_custom_call.1} parent=5 // pred_check_branch
        %145 = sbr.rel (%p142) target = $region12
      $region11: #{tpu_custom_call.1} parent=5 // pred_region
        %s146 = ssub.s32 %s17, 1
        // Predicated region
        $region13: #{tpu_custom_call.1} parent=11 // pred_check
          %p147 = pneg %p64
        $region14: #{tpu_custom_call.1} parent=11 // pred_check_branch
          %149 = sbr.rel (%p147) target = $region16
        $region15: #{tpu_custom_call.1} parent=11 // pred_region
          %s151 = ssub.s32 2048, 2048
          %152 = vsyncadd [#allocation6], %s151
          %s153 = sshll.u32 [#allocation5], 4
          %s154 = int_to_ptr.vmem [resolvable:$true] %s153
          %159 = dma.hbm_to_vmem [thread:$0]  %s1, 2048, %s154, [#allocation6], 512, 512, 32
        $region16: #{tpu_custom_call.1} parent=11 // pred_fallthru
          _
        // Predicated region
        $region17: #{tpu_custom_call.1} parent=11 // pred_check
          %p160 = pneg %p85
        $region18: #{tpu_custom_call.1} parent=11 // pred_check_branch
          %162 = sbr.rel (%p160) target = $region20
        $region19: #{tpu_custom_call.1} parent=11 // pred_region
          _
        $region20: #{tpu_custom_call.1} parent=11 // pred_fallthru
          _
        // Predicated region
        $region21: #{tpu_custom_call.1} parent=11 // pred_check
          %p163 = pneg %p106
        $region22: #{tpu_custom_call.1} parent=11 // pred_check_branch
          %165 = sbr.rel (%p163) target = $region24
        $region23: #{tpu_custom_call.1} parent=11 // pred_region
          _
        $region24: #{tpu_custom_call.1} parent=11 // pred_fallthru
          _
      $region12: #{tpu_custom_call.1} parent=5 // pred_fallthru
        _
      %p166 = scmp.lt.s32.totalorder %s17, 2
      // Predicated region
      $region25: #{tpu_custom_call.1} parent=5 // pred_check
        %p167 = pneg %p166
      $region26: #{tpu_custom_call.1} parent=5 // pred_check_branch
        %169 = sbr.rel (%p167) target = $region28
      $region27: #{tpu_custom_call.1} parent=5 // pred_region
        // Predicated region
        $region29: #{tpu_custom_call.1} parent=27 // pred_check
          %p170 = pneg %p37
        $region30: #{tpu_custom_call.1} parent=27 // pred_check_branch
          %172 = sbr.rel (%p170) target = $region32
        $region31: #{tpu_custom_call.1} parent=27 // pred_region
          %s173 = sand.u32 %s27, 1
          %s174 = scalar_lea.sflag [#allocation3], %s173
          %s175 = sand.u32 %s27, 1
          %s176 = smul.addr %s175, 16
          %s177 = scalar_lea.vmem [#allocation2], %s176
          %s179 = ssub.s32 256, 256
          %180 = vsyncadd %s174, %s179
          %s181 = smul.addr %s17, 4
          %s182 = smul.addr %s181, 64
          %s183 = scalar_lea.hbm %s0, %s182
          %s185 = sshll.u32 %s177, 4
          %s186 = int_to_ptr.vmem [resolvable:$true] %s185
          %188 = dma.hbm_to_vmem [thread:$0]  %s183, 256, %s186, %s174
        $region32: #{tpu_custom_call.1} parent=27 // pred_fallthru
          _
      $region28: #{tpu_custom_call.1} parent=5 // pred_fallthru
        _
      %p189 = scmp.le.s32.totalorder 1, %s17
      %p190 = scmp.lt.s32.totalorder %s17, 3
      %p191 = pnand %p189, %p190
      %p192 = pneg %p191
      // Predicated region
      $region33: #{tpu_custom_call.1} parent=5 // pred_check
        _
      $region34: #{tpu_custom_call.1} parent=5 // pred_check_branch
        %194 = sbr.rel (%p191) target = $region36
      $region35: #{tpu_custom_call.1} parent=5 // pred_region
        %s195 = ssub.s32 %s17, 1
        %s196 = sand.u32 %s30, 1
        %s197 = scalar_lea.sflag [#allocation3], %s196
        %s198 = sand.u32 %s30, 1
        %s199 = smul.addr %s198, 16
        %s200 = scalar_lea.vmem [#allocation2], %s199
        // Predicated region
        $region37: #{tpu_custom_call.1} parent=35 // pred_check
          %p201 = pneg %p43
        $region38: #{tpu_custom_call.1} parent=35 // pred_check_branch
          %203 = sbr.rel (%p201) target = $region40
        $region39: #{tpu_custom_call.1} parent=35 // pred_region
          %204 = dma.done %s197, 256
        $region40: #{tpu_custom_call.1} parent=35 // pred_fallthru
          _
        // Predicated region
        $region41: #{tpu_custom_call.1} parent=35 // pred_check
          %p205 = pneg %p64
        $region42: #{tpu_custom_call.1} parent=35 // pred_check_branch
          %207 = sbr.rel (%p205) target = $region44
        $region43: #{tpu_custom_call.1} parent=35 // pred_region
          %208 = dma.done [#allocation6], 2048
        $region44: #{tpu_custom_call.1} parent=35 // pred_fallthru
          _
        %s209 = sand.u32 %s30, 1
        %s210 = scalar_lea.sflag [#allocation3], %s209
        %s211 = sand.u32 %s30, 1
        %s212 = smul.addr %s211, 16
        %s213 = scalar_lea.vmem [#allocation2], %s212
        %p214 = pneg %p43
        %p215 = pneg %p40
        %p216 = pneg %p64
        %p217 = pneg %p61
        %p218 = pneg %p85
        %p219 = pneg %p82
        %p220 = pneg %p106
        %p221 = pneg %p103
        %p222 = pneg %p132
        %p223 = pneg %p129
        %s224 = sand.u32 %s119, 1
        %s225 = scalar_lea.sflag [#allocation4], %s224
        %s226 = sand.u32 %s119, 1
        %s227 = smul.addr %s226, 16
        %s228 = scalar_lea.vmem [#allocation7], %s227
        %v230 = vld [vmem:[%s200] sm:$0xff]
        %v231 = vld [vmem:[%s200 + $0x8] sm:$0xff]
        %v234 = vcombine.high %v230, %v230
        %v235 = vcombine.high %v231, %v231
        %238 = vrot.lane.b32.xlu0 %v230, 73
        %v239 = vpop.permute.xlu0 %238
        %240 = vrot.lane.b32.xlu0 %v234, 73
        %v241 = vpop.permute.xlu0 %240
        %242 = vrot.lane.b32.xlu0 %v231, 73
        %v243 = vpop.permute.xlu0 %242
        %244 = vrot.lane.b32.xlu0 %v235, 73
        %v245 = vpop.permute.xlu0 %244
        %v246 = vlaneseq
        %v247 = vand.u32 %v246, 127
        %vm248 = vcmp.lt.s32.totalorder %v247, 73
        %v249 = vsel %vm248, %v243, %v245
        %v250 = vsel %vm248, %v241, %v243
        %v251 = vsel %vm248, %v239, %v241
        %v252 = vsel %vm248, %v245, %v239
        %v253 = vld [vmem:[#allocation5] ss:$8 sm:$0xf]
        %v255 = vlaneseq
        %v256 = vshrl.u32 %v255, 7
        %v257 = vsub.s32 0, %v256
        %v258 = vrot.slane %v253, %v257
        %v259 = vlaneseq
        %v260 = vshrl.u32 %v259, 7
        %v261 = vsub.s32 1, %v260
        %v262 = vrot.slane %v253, %v261
        %v263 = vlaneseq
        %v264 = vshrl.u32 %v263, 7
        %v265 = vsub.s32 2, %v264
        %v266 = vrot.slane %v253, %v265
        %v267 = vlaneseq
        %v268 = vshrl.u32 %v267, 7
        %v269 = vsub.s32 3, %v268
        %v270 = vrot.slane %v253, %v269
        %v275 = vmul.f32 %v252, %v258
        %v276 = vmul.f32 %v251, %v262
        %v277 = vmul.f32 %v250, %v266
        %v278 = vmul.f32 %v249, %v270
        %v279 = vpack.c.bf16 %v275, %v275
        %v280 = vpack.c.bf16 %v276, %v276
        %v281 = vpack.c.bf16 %v277, %v277
        %v282 = vpack.c.bf16 %v278, %v278
        %283 = vrot.lane.b32.xlu0 %v230, 72
        %v284 = vpop.permute.xlu0 %283
        %285 = vrot.lane.b32.xlu0 %v234, 72
        %v286 = vpop.permute.xlu0 %285
        %287 = vrot.lane.b32.xlu0 %v231, 72
        %v288 = vpop.permute.xlu0 %287
        %289 = vrot.lane.b32.xlu0 %v235, 72
        %v290 = vpop.permute.xlu0 %289
        %vm291 = vcmp.lt.s32.totalorder %v247, 72
        %v292 = vsel %vm291, %v288, %v290
        %v293 = vsel %vm291, %v286, %v288
        %v294 = vsel %vm291, %v284, %v286
        %v295 = vsel %vm291, %v290, %v284
        %s296 = scalar_lea.vmem [#allocation5], 1
        %v297 = vld [vmem:[%s296] ss:$8 sm:$0xf]
        %v299 = vlaneseq
        %v300 = vshrl.u32 %v299, 7
        %v301 = vsub.s32 0, %v300
        %v302 = vrot.slane %v297, %v301
        %v303 = vlaneseq
        %v304 = vshrl.u32 %v303, 7
        %v305 = vsub.s32 1, %v304
        %v306 = vrot.slane %v297, %v305
        %v307 = vlaneseq
        %v308 = vshrl.u32 %v307, 7
        %v309 = vsub.s32 2, %v308
        %v310 = vrot.slane %v297, %v309
        %v311 = vlaneseq
        %v312 = vshrl.u32 %v311, 7
        %v313 = vsub.s32 3, %v312
        %v314 = vrot.slane %v297, %v313
        %v319 = vmul.f32 %v295, %v302
        %v320 = vmul.f32 %v294, %v306
        %v321 = vmul.f32 %v293, %v310
        %v322 = vmul.f32 %v292, %v314
        %v323 = vpack.c.bf16 %v319, %v319
        %v324 = vpack.c.bf16 %v320, %v320
        %v325 = vpack.c.bf16 %v321, %v321
        %v326 = vpack.c.bf16 %v322, %v322
        %327 = vrot.lane.b32.xlu0 %v230, 71
        %v328 = vpop.permute.xlu0 %327
        %329 = vrot.lane.b32.xlu0 %v234, 71
        %v330 = vpop.permute.xlu0 %329
        %331 = vrot.lane.b32.xlu0 %v231, 71
        %v332 = vpop.permute.xlu0 %331
        %333 = vrot.lane.b32.xlu0 %v235, 71
        %v334 = vpop.permute.xlu0 %333
        %vm335 = vcmp.lt.s32.totalorder %v247, 71
        %v336 = vsel %vm335, %v332, %v334
        %v337 = vsel %vm335, %v330, %v332
        %v338 = vsel %vm335, %v328, %v330
        %v339 = vsel %vm335, %v334, %v328
        %s340 = scalar_lea.vmem [#allocation5], 2
        %v341 = vld [vmem:[%s340] ss:$8 sm:$0xf]
        %v343 = vlaneseq
        %v344 = vshrl.u32 %v343, 7
        %v345 = vsub.s32 0, %v344
        %v346 = vrot.slane %v341, %v345
        %v347 = vlaneseq
        %v348 = vshrl.u32 %v347, 7
        %v349 = vsub.s32 1, %v348
        %v350 = vrot.slane %v341, %v349
        %v351 = vlaneseq
        %v352 = vshrl.u32 %v351, 7
        %v353 = vsub.s32 2, %v352
        %v354 = vrot.slane %v341, %v353
        %v355 = vlaneseq
        %v356 = vshrl.u32 %v355, 7
        %v357 = vsub.s32 3, %v356
        %v358 = vrot.slane %v341, %v357
        %v363 = vmul.f32 %v339, %v346
        %v364 = vmul.f32 %v338, %v350
        %v365 = vmul.f32 %v337, %v354
        %v366 = vmul.f32 %v336, %v358
        %v367 = vpack.c.bf16 %v363, %v363
        %v368 = vpack.c.bf16 %v364, %v364
        %v369 = vpack.c.bf16 %v365, %v365
        %v370 = vpack.c.bf16 %v366, %v366
        %371 = vrot.lane.b32.xlu0 %v230, 65
        %v372 = vpop.permute.xlu0 %371
        %373 = vrot.lane.b32.xlu0 %v234, 65
        %v374 = vpop.permute.xlu0 %373
        %375 = vrot.lane.b32.xlu0 %v231, 65
        %v376 = vpop.permute.xlu0 %375
        %377 = vrot.lane.b32.xlu0 %v235, 65
        %v378 = vpop.permute.xlu0 %377
        %vm379 = vcmp.lt.s32.totalorder %v247, 65
        %v380 = vsel %vm379, %v376, %v378
        %v381 = vsel %vm379, %v374, %v376
        %v382 = vsel %vm379, %v372, %v374
        %v383 = vsel %vm379, %v378, %v372
        %s384 = scalar_lea.vmem [#allocation5], 3
        %v385 = vld [vmem:[%s384] ss:$8 sm:$0xf]
        %v387 = vlaneseq
        %v388 = vshrl.u32 %v387, 7
        %v389 = vsub.s32 0, %v388
        %v390 = vrot.slane %v385, %v389
        %v391 = vlaneseq
        %v392 = vshrl.u32 %v391, 7
        %v393 = vsub.s32 1, %v392
        %v394 = vrot.slane %v385, %v393
        %v395 = vlaneseq
        %v396 = vshrl.u32 %v395, 7
        %v397 = vsub.s32 2, %v396
        %v398 = vrot.slane %v385, %v397
        %v399 = vlaneseq
        %v400 = vshrl.u32 %v399, 7
        %v401 = vsub.s32 3, %v400
        %v402 = vrot.slane %v385, %v401
        %v407 = vmul.f32 %v383, %v390
        %v408 = vmul.f32 %v382, %v394
        %v409 = vmul.f32 %v381, %v398
        %v410 = vmul.f32 %v380, %v402
        %v411 = vpack.c.bf16 %v407, %v407
        %v412 = vpack.c.bf16 %v408, %v408
        %v413 = vpack.c.bf16 %v409, %v409
        %v414 = vpack.c.bf16 %v410, %v410
        %415 = vrot.lane.b32.xlu0 %v230, 64
        %v416 = vpop.permute.xlu0 %415
        %417 = vrot.lane.b32.xlu0 %v234, 64
        %v418 = vpop.permute.xlu0 %417
        %419 = vrot.lane.b32.xlu0 %v231, 64
        %v420 = vpop.permute.xlu0 %419
        %421 = vrot.lane.b32.xlu0 %v235, 64
        %v422 = vpop.permute.xlu0 %421
        %vm423 = vcmp.lt.s32.totalorder %v247, 64
        %v424 = vsel %vm423, %v420, %v422
        %v425 = vsel %vm423, %v418, %v420
        %v426 = vsel %vm423, %v416, %v418
        %v427 = vsel %vm423, %v422, %v416
        %s428 = scalar_lea.vmem [#allocation5], 4
        %v429 = vld [vmem:[%s428] ss:$8 sm:$0xf]
        %v431 = vlaneseq
        %v432 = vshrl.u32 %v431, 7
        %v433 = vsub.s32 0, %v432
        %v434 = vrot.slane %v429, %v433
        %v435 = vlaneseq
        %v436 = vshrl.u32 %v435, 7
        %v437 = vsub.s32 1, %v436
        %v438 = vrot.slane %v429, %v437
        %v439 = vlaneseq
        %v440 = vshrl.u32 %v439, 7
        %v441 = vsub.s32 2, %v440
        %v442 = vrot.slane %v429, %v441
        %v443 = vlaneseq
        %v444 = vshrl.u32 %v443, 7
        %v445 = vsub.s32 3, %v444
        %v446 = vrot.slane %v429, %v445
        %v451 = vmul.f32 %v427, %v434
        %v452 = vmul.f32 %v426, %v438
        %v453 = vmul.f32 %v425, %v442
        %v454 = vmul.f32 %v424, %v446
        %v455 = vpack.c.bf16 %v451, %v451
        %v456 = vpack.c.bf16 %v452, %v452
        %v457 = vpack.c.bf16 %v453, %v453
        %v458 = vpack.c.bf16 %v454, %v454
        %459 = vrot.lane.b32.xlu0 %v230, 63
        %v460 = vpop.permute.xlu0 %459
        %461 = vrot.lane.b32.xlu0 %v234, 63
        %v462 = vpop.permute.xlu0 %461
        %463 = vrot.lane.b32.xlu0 %v231, 63
        %v464 = vpop.permute.xlu0 %463
        %465 = vrot.lane.b32.xlu0 %v235, 63
        %v466 = vpop.permute.xlu0 %465
        %vm467 = vcmp.lt.s32.totalorder %v247, 63
        %v468 = vsel %vm467, %v464, %v466
        %v469 = vsel %vm467, %v462, %v464
        %v470 = vsel %vm467, %v460, %v462
        %v471 = vsel %vm467, %v466, %v460
        %s472 = scalar_lea.vmem [#allocation5], 5
        %v473 = vld [vmem:[%s472] ss:$8 sm:$0xf]
        %v475 = vlaneseq
        %v476 = vshrl.u32 %v475, 7
        %v477 = vsub.s32 0, %v476
        %v478 = vrot.slane %v473, %v477
        %v479 = vlaneseq
        %v480 = vshrl.u32 %v479, 7
        %v481 = vsub.s32 1, %v480
        %v482 = vrot.slane %v473, %v481
        %v483 = vlaneseq
        %v484 = vshrl.u32 %v483, 7
        %v485 = vsub.s32 2, %v484
        %v486 = vrot.slane %v473, %v485
        %v487 = vlaneseq
        %v488 = vshrl.u32 %v487, 7
        %v489 = vsub.s32 3, %v488
        %v490 = vrot.slane %v473, %v489
        %v495 = vmul.f32 %v471, %v478
        %v496 = vmul.f32 %v470, %v482
        %v497 = vmul.f32 %v469, %v486
        %v498 = vmul.f32 %v468, %v490
        %v499 = vpack.c.bf16 %v495, %v495
        %v500 = vpack.c.bf16 %v496, %v496
        %v501 = vpack.c.bf16 %v497, %v497
        %v502 = vpack.c.bf16 %v498, %v498
        %503 = vrot.lane.b32.xlu0 %v230, 57
        %v504 = vpop.permute.xlu0 %503
        %505 = vrot.lane.b32.xlu0 %v234, 57
        %v506 = vpop.permute.xlu0 %505
        %507 = vrot.lane.b32.xlu0 %v231, 57
        %v508 = vpop.permute.xlu0 %507
        %509 = vrot.lane.b32.xlu0 %v235, 57
        %v510 = vpop.permute.xlu0 %509
        %vm511 = vcmp.lt.s32.totalorder %v247, 57
        %v512 = vsel %vm511, %v508, %v510
        %v513 = vsel %vm511, %v506, %v508
        %v514 = vsel %vm511, %v504, %v506
        %v515 = vsel %vm511, %v510, %v504
        %s516 = scalar_lea.vmem [#allocation5], 6
        %v517 = vld [vmem:[%s516] ss:$8 sm:$0xf]
        %v519 = vlaneseq
        %v520 = vshrl.u32 %v519, 7
        %v521 = vsub.s32 0, %v520
        %v522 = vrot.slane %v517, %v521
        %v523 = vlaneseq
        %v524 = vshrl.u32 %v523, 7
        %v525 = vsub.s32 1, %v524
        %v526 = vrot.slane %v517, %v525
        %v527 = vlaneseq
        %v528 = vshrl.u32 %v527, 7
        %v529 = vsub.s32 2, %v528
        %v530 = vrot.slane %v517, %v529
        %v531 = vlaneseq
        %v532 = vshrl.u32 %v531, 7
        %v533 = vsub.s32 3, %v532
        %v534 = vrot.slane %v517, %v533
        %v539 = vmul.f32 %v515, %v522
        %v540 = vmul.f32 %v514, %v526
        %v541 = vmul.f32 %v513, %v530
        %v542 = vmul.f32 %v512, %v534
        %v543 = vpack.c.bf16 %v539, %v539
        %v544 = vpack.c.bf16 %v540, %v540
        %v545 = vpack.c.bf16 %v541, %v541
        %v546 = vpack.c.bf16 %v542, %v542
        %547 = vrot.lane.b32.xlu0 %v230, 56
        %v548 = vpop.permute.xlu0 %547
        %549 = vrot.lane.b32.xlu0 %v234, 56
        %v550 = vpop.permute.xlu0 %549
        %551 = vrot.lane.b32.xlu0 %v231, 56
        %v552 = vpop.permute.xlu0 %551
        %553 = vrot.lane.b32.xlu0 %v235, 56
        %v554 = vpop.permute.xlu0 %553
        %vm555 = vcmp.lt.s32.totalorder %v247, 56
        %v556 = vsel %vm555, %v552, %v554
        %v557 = vsel %vm555, %v550, %v552
        %v558 = vsel %vm555, %v548, %v550
        %v559 = vsel %vm555, %v554, %v548
        %s560 = scalar_lea.vmem [#allocation5], 7
        %v561 = vld [vmem:[%s560] ss:$8 sm:$0xf]
        %v563 = vlaneseq
        %v564 = vshrl.u32 %v563, 7
        %v565 = vsub.s32 0, %v564
        %v566 = vrot.slane %v561, %v565
        %v567 = vlaneseq
        %v568 = vshrl.u32 %v567, 7
        %v569 = vsub.s32 1, %v568
        %v570 = vrot.slane %v561, %v569
        %v571 = vlaneseq
        %v572 = vshrl.u32 %v571, 7
        %v573 = vsub.s32 2, %v572
        %v574 = vrot.slane %v561, %v573
        %v575 = vlaneseq
        %v576 = vshrl.u32 %v575, 7
        %v577 = vsub.s32 3, %v576
        %v578 = vrot.slane %v561, %v577
        %v583 = vmul.f32 %v559, %v566
        %v584 = vmul.f32 %v558, %v570
        %v585 = vmul.f32 %v557, %v574
        %v586 = vmul.f32 %v556, %v578
        %v587 = vpack.c.bf16 %v583, %v583
        %v588 = vpack.c.bf16 %v584, %v584
        %v589 = vpack.c.bf16 %v585, %v585
        %v590 = vpack.c.bf16 %v586, %v586
        %591 = vrot.lane.b32.xlu0 %v230, 55
        %v592 = vpop.permute.xlu0 %591
        %593 = vrot.lane.b32.xlu0 %v234, 55
        %v594 = vpop.permute.xlu0 %593
        %595 = vrot.lane.b32.xlu0 %v231, 55
        %v596 = vpop.permute.xlu0 %595
        %597 = vrot.lane.b32.xlu0 %v235, 55
        %v598 = vpop.permute.xlu0 %597
        %vm599 = vcmp.lt.s32.totalorder %v247, 55
        %v600 = vsel %vm599, %v596, %v598
        %v601 = vsel %vm599, %v594, %v596
        %v602 = vsel %vm599, %v592, %v594
        %v603 = vsel %vm599, %v598, %v592
        %s604 = scalar_lea.vmem [#allocation5], 32
        %v605 = vld [vmem:[%s604] ss:$8 sm:$0xf]
        %v607 = vlaneseq
        %v608 = vshrl.u32 %v607, 7
        %v609 = vsub.s32 0, %v608
        %v610 = vrot.slane %v605, %v609
        %v611 = vlaneseq
        %v612 = vshrl.u32 %v611, 7
        %v613 = vsub.s32 1, %v612
        %v614 = vrot.slane %v605, %v613
        %v615 = vlaneseq
        %v616 = vshrl.u32 %v615, 7
        %v617 = vsub.s32 2, %v616
        %v618 = vrot.slane %v605, %v617
        %v619 = vlaneseq
        %v620 = vshrl.u32 %v619, 7
        %v621 = vsub.s32 3, %v620
        %v622 = vrot.slane %v605, %v621
        %v627 = vmul.f32 %v603, %v610
        %v628 = vmul.f32 %v602, %v614
        %v629 = vmul.f32 %v601, %v618
        %v630 = vmul.f32 %v600, %v622
        %v631 = vpack.c.bf16 %v627, %v627
        %v632 = vpack.c.bf16 %v628, %v628
        %v633 = vpack.c.bf16 %v629, %v629
        %v634 = vpack.c.bf16 %v630, %v630
        %635 = vrot.lane.b32.xlu0 %v230, 9
        %v636 = vpop.permute.xlu0 %635
        %637 = vrot.lane.b32.xlu0 %v234, 9
        %v638 = vpop.permute.xlu0 %637
        %639 = vrot.lane.b32.xlu0 %v231, 9
        %v640 = vpop.permute.xlu0 %639
        %641 = vrot.lane.b32.xlu0 %v235, 9
        %v642 = vpop.permute.xlu0 %641
        %vm643 = vcmp.lt.s32.totalorder %v247, 9
        %v644 = vsel %vm643, %v640, %v642
        %v645 = vsel %vm643, %v638, %v640
        %v646 = vsel %vm643, %v636, %v638
        %v647 = vsel %vm643, %v642, %v636
        %s648 = scalar_lea.vmem [#allocation5], 33
        %v649 = vld [vmem:[%s648] ss:$8 sm:$0xf]
        %v651 = vlaneseq
        %v652 = vshrl.u32 %v651, 7
        %v653 = vsub.s32 0, %v652
        %v654 = vrot.slane %v649, %v653
        %v655 = vlaneseq
        %v656 = vshrl.u32 %v655, 7
        %v657 = vsub.s32 1, %v656
        %v658 = vrot.slane %v649, %v657
        %v659 = vlaneseq
        %v660 = vshrl.u32 %v659, 7
        %v661 = vsub.s32 2, %v660
        %v662 = vrot.slane %v649, %v661
        %v663 = vlaneseq
        %v664 = vshrl.u32 %v663, 7
        %v665 = vsub.s32 3, %v664
        %v666 = vrot.slane %v649, %v665
        %v671 = vmul.f32 %v647, %v654
        %v672 = vmul.f32 %v646, %v658
        %v673 = vmul.f32 %v645, %v662
        %v674 = vmul.f32 %v644, %v666
        %v675 = vpack.c.bf16 %v671, %v671
        %v676 = vpack.c.bf16 %v672, %v672
        %v677 = vpack.c.bf16 %v673, %v673
        %v678 = vpack.c.bf16 %v674, %v674
        %679 = vrot.lane.b32.xlu0 %v230, 8
        %v680 = vpop.permute.xlu0 %679
        %681 = vrot.lane.b32.xlu0 %v234, 8
        %v682 = vpop.permute.xlu0 %681
        %683 = vrot.lane.b32.xlu0 %v231, 8
        %v684 = vpop.permute.xlu0 %683
        %685 = vrot.lane.b32.xlu0 %v235, 8
        %v686 = vpop.permute.xlu0 %685
        %vm687 = vcmp.lt.s32.totalorder %v247, 8
        %v688 = vsel %vm687, %v684, %v686
        %v689 = vsel %vm687, %v682, %v684
        %v690 = vsel %vm687, %v680, %v682
        %v691 = vsel %vm687, %v686, %v680
        %s692 = scalar_lea.vmem [#allocation5], 34
        %v693 = vld [vmem:[%s692] ss:$8 sm:$0xf]
        %v695 = vlaneseq
        %v696 = vshrl.u32 %v695, 7
        %v697 = vsub.s32 0, %v696
        %v698 = vrot.slane %v693, %v697
        %v699 = vlaneseq
        %v700 = vshrl.u32 %v699, 7
        %v701 = vsub.s32 1, %v700
        %v702 = vrot.slane %v693, %v701
        %v703 = vlaneseq
        %v704 = vshrl.u32 %v703, 7
        %v705 = vsub.s32 2, %v704
        %v706 = vrot.slane %v693, %v705
        %v707 = vlaneseq
        %v708 = vshrl.u32 %v707, 7
        %v709 = vsub.s32 3, %v708
        %v710 = vrot.slane %v693, %v709
        %v715 = vmul.f32 %v691, %v698
        %v716 = vmul.f32 %v690, %v702
        %v717 = vmul.f32 %v689, %v706
        %v718 = vmul.f32 %v688, %v710
        %v719 = vpack.c.bf16 %v715, %v715
        %v720 = vpack.c.bf16 %v716, %v716
        %v721 = vpack.c.bf16 %v717, %v717
        %v722 = vpack.c.bf16 %v718, %v718
        %723 = vrot.lane.b32.xlu0 %v230, 7
        %v724 = vpop.permute.xlu0 %723
        %725 = vrot.lane.b32.xlu0 %v234, 7
        %v726 = vpop.permute.xlu0 %725
        %727 = vrot.lane.b32.xlu0 %v231, 7
        %v728 = vpop.permute.xlu0 %727
        %729 = vrot.lane.b32.xlu0 %v235, 7
        %v730 = vpop.permute.xlu0 %729
        %vm731 = vcmp.lt.s32.totalorder %v247, 7
        %v732 = vsel %vm731, %v728, %v730
        %v733 = vsel %vm731, %v726, %v728
        %v734 = vsel %vm731, %v724, %v726
        %v735 = vsel %vm731, %v730, %v724
        %s736 = scalar_lea.vmem [#allocation5], 35
        %v737 = vld [vmem:[%s736] ss:$8 sm:$0xf]
        %v739 = vlaneseq
        %v740 = vshrl.u32 %v739, 7
        %v741 = vsub.s32 0, %v740
        %v742 = vrot.slane %v737, %v741
        %v743 = vlaneseq
        %v744 = vshrl.u32 %v743, 7
        %v745 = vsub.s32 1, %v744
        %v746 = vrot.slane %v737, %v745
        %v747 = vlaneseq
        %v748 = vshrl.u32 %v747, 7
        %v749 = vsub.s32 2, %v748
        %v750 = vrot.slane %v737, %v749
        %v751 = vlaneseq
        %v752 = vshrl.u32 %v751, 7
        %v753 = vsub.s32 3, %v752
        %v754 = vrot.slane %v737, %v753
        %v759 = vmul.f32 %v735, %v742
        %v760 = vmul.f32 %v734, %v746
        %v761 = vmul.f32 %v733, %v750
        %v762 = vmul.f32 %v732, %v754
        %v763 = vpack.c.bf16 %v759, %v759
        %v764 = vpack.c.bf16 %v760, %v760
        %v765 = vpack.c.bf16 %v761, %v761
        %v766 = vpack.c.bf16 %v762, %v762
        %767 = vrot.lane.b32.xlu0 %v230, 1
        %v768 = vpop.permute.xlu0 %767
        %769 = vrot.lane.b32.xlu0 %v234, 1
        %v770 = vpop.permute.xlu0 %769
        %771 = vrot.lane.b32.xlu0 %v231, 1
        %v772 = vpop.permute.xlu0 %771
        %773 = vrot.lane.b32.xlu0 %v235, 1
        %v774 = vpop.permute.xlu0 %773
        %vm775 = vcmp.lt.s32.totalorder %v247, 1
        %v776 = vsel %vm775, %v772, %v774
        %v777 = vsel %vm775, %v770, %v772
        %v778 = vsel %vm775, %v768, %v770
        %v779 = vsel %vm775, %v774, %v768
        %s780 = scalar_lea.vmem [#allocation5], 36
        %v781 = vld [vmem:[%s780] ss:$8 sm:$0xf]
        %v783 = vlaneseq
        %v784 = vshrl.u32 %v783, 7
        %v785 = vsub.s32 0, %v784
        %v786 = vrot.slane %v781, %v785
        %v787 = vlaneseq
        %v788 = vshrl.u32 %v787, 7
        %v789 = vsub.s32 1, %v788
        %v790 = vrot.slane %v781, %v789
        %v791 = vlaneseq
        %v792 = vshrl.u32 %v791, 7
        %v793 = vsub.s32 2, %v792
        %v794 = vrot.slane %v781, %v793
        %v795 = vlaneseq
        %v796 = vshrl.u32 %v795, 7
        %v797 = vsub.s32 3, %v796
        %v798 = vrot.slane %v781, %v797
        %v803 = vmul.f32 %v779, %v786
        %v804 = vmul.f32 %v778, %v790
        %v805 = vmul.f32 %v777, %v794
        %v806 = vmul.f32 %v776, %v798
        %v807 = vpack.c.bf16 %v803, %v803
        %v808 = vpack.c.bf16 %v804, %v804
        %v809 = vpack.c.bf16 %v805, %v805
        %v810 = vpack.c.bf16 %v806, %v806
        %v811 = vpack.c.bf16 %v230, %v230
        %v812 = vpack.c.bf16 %v234, %v234
        %v813 = vpack.c.bf16 %v231, %v231
        %v814 = vpack.c.bf16 %v235, %v235
        %815 = vrot.lane.b32.xlu0 %v230, 127
        %v816 = vpop.permute.xlu0 %815
        %817 = vrot.lane.b32.xlu0 %v234, 127
        %v818 = vpop.permute.xlu0 %817
        %819 = vrot.lane.b32.xlu0 %v231, 127
        %v820 = vpop.permute.xlu0 %819
        %821 = vrot.lane.b32.xlu0 %v235, 127
        %v822 = vpop.permute.xlu0 %821
        %vm823 = vcmp.lt.s32.totalorder %v247, 127
        %v824 = vsel %vm823, %v820, %v822
        %v825 = vsel %vm823, %v818, %v820
        %v826 = vsel %vm823, %v816, %v818
        %v827 = vsel %vm823, %v822, %v816
        %s828 = scalar_lea.vmem [#allocation5], 38
        %v829 = vld [vmem:[%s828] ss:$8 sm:$0xf]
        %v831 = vlaneseq
        %v832 = vshrl.u32 %v831, 7
        %v833 = vsub.s32 0, %v832
        %v834 = vrot.slane %v829, %v833
        %v835 = vlaneseq
        %v836 = vshrl.u32 %v835, 7
        %v837 = vsub.s32 1, %v836
        %v838 = vrot.slane %v829, %v837
        %v839 = vlaneseq
        %v840 = vshrl.u32 %v839, 7
        %v841 = vsub.s32 2, %v840
        %v842 = vrot.slane %v829, %v841
        %v843 = vlaneseq
        %v844 = vshrl.u32 %v843, 7
        %v845 = vsub.s32 3, %v844
        %v846 = vrot.slane %v829, %v845
        %v851 = vmul.f32 %v826, %v834
        %v852 = vmul.f32 %v825, %v838
        %v853 = vmul.f32 %v824, %v842
        %v854 = vmul.f32 %v827, %v846
        %v855 = vpack.c.bf16 %v851, %v851
        %v856 = vpack.c.bf16 %v852, %v852
        %v857 = vpack.c.bf16 %v853, %v853
        %v858 = vpack.c.bf16 %v854, %v854
        %859 = vrot.lane.b32.xlu0 %v230, 121
        %v860 = vpop.permute.xlu0 %859
        %861 = vrot.lane.b32.xlu0 %v234, 121
        %v862 = vpop.permute.xlu0 %861
        %863 = vrot.lane.b32.xlu0 %v231, 121
        %v864 = vpop.permute.xlu0 %863
        %865 = vrot.lane.b32.xlu0 %v235, 121
        %v866 = vpop.permute.xlu0 %865
        %vm867 = vcmp.lt.s32.totalorder %v247, 121
        %v868 = vsel %vm867, %v864, %v866
        %v869 = vsel %vm867, %v862, %v864
        %v870 = vsel %vm867, %v860, %v862
        %v871 = vsel %vm867, %v866, %v860
        %s872 = scalar_lea.vmem [#allocation5], 39
        %v873 = vld [vmem:[%s872] ss:$8 sm:$0xf]
        %v875 = vlaneseq
        %v876 = vshrl.u32 %v875, 7
        %v877 = vsub.s32 0, %v876
        %v878 = vrot.slane %v873, %v877
        %v879 = vlaneseq
        %v880 = vshrl.u32 %v879, 7
        %v881 = vsub.s32 1, %v880
        %v882 = vrot.slane %v873, %v881
        %v883 = vlaneseq
        %v884 = vshrl.u32 %v883, 7
        %v885 = vsub.s32 2, %v884
        %v886 = vrot.slane %v873, %v885
        %v887 = vlaneseq
        %v888 = vshrl.u32 %v887, 7
        %v889 = vsub.s32 3, %v888
        %v890 = vrot.slane %v873, %v889
        %v895 = vmul.f32 %v870, %v878
        %v896 = vmul.f32 %v869, %v882
        %v897 = vmul.f32 %v868, %v886
        %v898 = vmul.f32 %v871, %v890
        %v899 = vpack.c.bf16 %v895, %v895
        %v900 = vpack.c.bf16 %v896, %v896
        %v901 = vpack.c.bf16 %v897, %v897
        %v902 = vpack.c.bf16 %v898, %v898
        %903 = vrot.lane.b32.xlu0 %v230, 120
        %v904 = vpop.permute.xlu0 %903
        %905 = vrot.lane.b32.xlu0 %v234, 120
        %v906 = vpop.permute.xlu0 %905
        %907 = vrot.lane.b32.xlu0 %v231, 120
        %v908 = vpop.permute.xlu0 %907
        %909 = vrot.lane.b32.xlu0 %v235, 120
        %v910 = vpop.permute.xlu0 %909
        %vm911 = vcmp.lt.s32.totalorder %v247, 120
        %v912 = vsel %vm911, %v908, %v910
        %v913 = vsel %vm911, %v906, %v908
        %v914 = vsel %vm911, %v904, %v906
        %v915 = vsel %vm911, %v910, %v904
        %s916 = scalar_lea.vmem [#allocation5], 64
        %v917 = vld [vmem:[%s916] ss:$8 sm:$0xf]
        %v919 = vlaneseq
        %v920 = vshrl.u32 %v919, 7
        %v921 = vsub.s32 0, %v920
        %v922 = vrot.slane %v917, %v921
        %v923 = vlaneseq
        %v924 = vshrl.u32 %v923, 7
        %v925 = vsub.s32 1, %v924
        %v926 = vrot.slane %v917, %v925
        %v927 = vlaneseq
        %v928 = vshrl.u32 %v927, 7
        %v929 = vsub.s32 2, %v928
        %v930 = vrot.slane %v917, %v929
        %v931 = vlaneseq
        %v932 = vshrl.u32 %v931, 7
        %v933 = vsub.s32 3, %v932
        %v934 = vrot.slane %v917, %v933
        %v939 = vmul.f32 %v914, %v922
        %v940 = vmul.f32 %v913, %v926
        %v941 = vmul.f32 %v912, %v930
        %v942 = vmul.f32 %v915, %v934
        %v943 = vpack.c.bf16 %v939, %v939
        %v944 = vpack.c.bf16 %v940, %v940
        %v945 = vpack.c.bf16 %v941, %v941
        %v946 = vpack.c.bf16 %v942, %v942
        %947 = vrot.lane.b32.xlu0 %v230, 119
        %v948 = vpop.permute.xlu0 %947
        %949 = vrot.lane.b32.xlu0 %v234, 119
        %v950 = vpop.permute.xlu0 %949
        %951 = vrot.lane.b32.xlu0 %v231, 119
        %v952 = vpop.permute.xlu0 %951
        %953 = vrot.lane.b32.xlu0 %v235, 119
        %v954 = vpop.permute.xlu0 %953
        %vm955 = vcmp.lt.s32.totalorder %v247, 119
        %v956 = vsel %vm955, %v952, %v954
        %v957 = vsel %vm955, %v950, %v952
        %v958 = vsel %vm955, %v948, %v950
        %v959 = vsel %vm955, %v954, %v948
        %s960 = scalar_lea.vmem [#allocation5], 65
        %v961 = vld [vmem:[%s960] ss:$8 sm:$0xf]
        %v963 = vlaneseq
        %v964 = vshrl.u32 %v963, 7
        %v965 = vsub.s32 0, %v964
        %v966 = vrot.slane %v961, %v965
        %v967 = vlaneseq
        %v968 = vshrl.u32 %v967, 7
        %v969 = vsub.s32 1, %v968
        %v970 = vrot.slane %v961, %v969
        %v971 = vlaneseq
        %v972 = vshrl.u32 %v971, 7
        %v973 = vsub.s32 2, %v972
        %v974 = vrot.slane %v961, %v973
        %v975 = vlaneseq
        %v976 = vshrl.u32 %v975, 7
        %v977 = vsub.s32 3, %v976
        %v978 = vrot.slane %v961, %v977
        %v983 = vmul.f32 %v958, %v966
        %v984 = vmul.f32 %v957, %v970
        %v985 = vmul.f32 %v956, %v974
        %v986 = vmul.f32 %v959, %v978
        %v987 = vpack.c.bf16 %v983, %v983
        %v988 = vpack.c.bf16 %v984, %v984
        %v989 = vpack.c.bf16 %v985, %v985
        %v990 = vpack.c.bf16 %v986, %v986
        %s991 = scalar_lea.vmem [#allocation5], 66
        %v992 = vld [vmem:[%s991] ss:$8 sm:$0xf]
        %v994 = vlaneseq
        %v995 = vshrl.u32 %v994, 7
        %v996 = vsub.s32 0, %v995
        %v997 = vrot.slane %v992, %v996
        %v998 = vlaneseq
        %v999 = vshrl.u32 %v998, 7
        %v1000 = vsub.s32 1, %v999
        %v1001 = vrot.slane %v992, %v1000
        %v1002 = vlaneseq
        %v1003 = vshrl.u32 %v1002, 7
        %v1004 = vsub.s32 2, %v1003
        %v1005 = vrot.slane %v992, %v1004
        %v1006 = vlaneseq
        %v1007 = vshrl.u32 %v1006, 7
        %v1008 = vsub.s32 3, %v1007
        %v1009 = vrot.slane %v992, %v1008
        %v1014 = vmul.f32 %v251, %v997
        %v1015 = vmul.f32 %v250, %v1001
        %v1016 = vmul.f32 %v249, %v1005
        %v1017 = vmul.f32 %v252, %v1009
        %v1018 = vpack.c.bf16 %v1014, %v1014
        %v1019 = vpack.c.bf16 %v1015, %v1015
        %v1020 = vpack.c.bf16 %v1016, %v1016
        %v1021 = vpack.c.bf16 %v1017, %v1017
        %s1022 = scalar_lea.vmem [#allocation5], 67
        %v1023 = vld [vmem:[%s1022] ss:$8 sm:$0xf]
        %v1025 = vlaneseq
        %v1026 = vshrl.u32 %v1025, 7
        %v1027 = vsub.s32 0, %v1026
        %v1028 = vrot.slane %v1023, %v1027
        %v1029 = vlaneseq
        %v1030 = vshrl.u32 %v1029, 7
        %v1031 = vsub.s32 1, %v1030
        %v1032 = vrot.slane %v1023, %v1031
        %v1033 = vlaneseq
        %v1034 = vshrl.u32 %v1033, 7
        %v1035 = vsub.s32 2, %v1034
        %v1036 = vrot.slane %v1023, %v1035
        %v1037 = vlaneseq
        %v1038 = vshrl.u32 %v1037, 7
        %v1039 = vsub.s32 3, %v1038
        %v1040 = vrot.slane %v1023, %v1039
        %v1045 = vmul.f32 %v294, %v1028
        %v1046 = vmul.f32 %v293, %v1032
        %v1047 = vmul.f32 %v292, %v1036
        %v1048 = vmul.f32 %v295, %v1040
        %v1049 = vpack.c.bf16 %v1045, %v1045
        %v1050 = vpack.c.bf16 %v1046, %v1046
        %v1051 = vpack.c.bf16 %v1047, %v1047
        %v1052 = vpack.c.bf16 %v1048, %v1048
        %s1053 = scalar_lea.vmem [#allocation5], 68
        %v1054 = vld [vmem:[%s1053] ss:$8 sm:$0xf]
        %v1056 = vlaneseq
        %v1057 = vshrl.u32 %v1056, 7
        %v1058 = vsub.s32 0, %v1057
        %v1059 = vrot.slane %v1054, %v1058
        %v1060 = vlaneseq
        %v1061 = vshrl.u32 %v1060, 7
        %v1062 = vsub.s32 1, %v1061
        %v1063 = vrot.slane %v1054, %v1062
        %v1064 = vlaneseq
        %v1065 = vshrl.u32 %v1064, 7
        %v1066 = vsub.s32 2, %v1065
        %v1067 = vrot.slane %v1054, %v1066
        %v1068 = vlaneseq
        %v1069 = vshrl.u32 %v1068, 7
        %v1070 = vsub.s32 3, %v1069
        %v1071 = vrot.slane %v1054, %v1070
        %v1076 = vmul.f32 %v338, %v1059
        %v1077 = vmul.f32 %v337, %v1063
        %v1078 = vmul.f32 %v336, %v1067
        %v1079 = vmul.f32 %v339, %v1071
        %v1080 = vpack.c.bf16 %v1076, %v1076
        %v1081 = vpack.c.bf16 %v1077, %v1077
        %v1082 = vpack.c.bf16 %v1078, %v1078
        %v1083 = vpack.c.bf16 %v1079, %v1079
        %s1084 = scalar_lea.vmem [#allocation5], 69
        %v1085 = vld [vmem:[%s1084] ss:$8 sm:$0xf]
        %v1087 = vlaneseq
        %v1088 = vshrl.u32 %v1087, 7
        %v1089 = vsub.s32 0, %v1088
        %v1090 = vrot.slane %v1085, %v1089
        %v1091 = vlaneseq
        %v1092 = vshrl.u32 %v1091, 7
        %v1093 = vsub.s32 1, %v1092
        %v1094 = vrot.slane %v1085, %v1093
        %v1095 = vlaneseq
        %v1096 = vshrl.u32 %v1095, 7
        %v1097 = vsub.s32 2, %v1096
        %v1098 = vrot.slane %v1085, %v1097
        %v1099 = vlaneseq
        %v1100 = vshrl.u32 %v1099, 7
        %v1101 = vsub.s32 3, %v1100
        %v1102 = vrot.slane %v1085, %v1101
        %v1107 = vmul.f32 %v382, %v1090
        %v1108 = vmul.f32 %v381, %v1094
        %v1109 = vmul.f32 %v380, %v1098
        %v1110 = vmul.f32 %v383, %v1102
        %v1111 = vpack.c.bf16 %v1107, %v1107
        %v1112 = vpack.c.bf16 %v1108, %v1108
        %v1113 = vpack.c.bf16 %v1109, %v1109
        %v1114 = vpack.c.bf16 %v1110, %v1110
        %s1115 = scalar_lea.vmem [#allocation5], 70
        %v1116 = vld [vmem:[%s1115] ss:$8 sm:$0xf]
        %v1118 = vlaneseq
        %v1119 = vshrl.u32 %v1118, 7
        %v1120 = vsub.s32 0, %v1119
        %v1121 = vrot.slane %v1116, %v1120
        %v1122 = vlaneseq
        %v1123 = vshrl.u32 %v1122, 7
        %v1124 = vsub.s32 1, %v1123
        %v1125 = vrot.slane %v1116, %v1124
        %v1126 = vlaneseq
        %v1127 = vshrl.u32 %v1126, 7
        %v1128 = vsub.s32 2, %v1127
        %v1129 = vrot.slane %v1116, %v1128
        %v1130 = vlaneseq
        %v1131 = vshrl.u32 %v1130, 7
        %v1132 = vsub.s32 3, %v1131
        %v1133 = vrot.slane %v1116, %v1132
        %v1138 = vmul.f32 %v426, %v1121
        %v1139 = vmul.f32 %v425, %v1125
        %v1140 = vmul.f32 %v424, %v1129
        %v1141 = vmul.f32 %v427, %v1133
        %v1142 = vpack.c.bf16 %v1138, %v1138
        %v1143 = vpack.c.bf16 %v1139, %v1139
        %v1144 = vpack.c.bf16 %v1140, %v1140
        %v1145 = vpack.c.bf16 %v1141, %v1141
        %s1146 = scalar_lea.vmem [#allocation5], 71
        %v1147 = vld [vmem:[%s1146] ss:$8 sm:$0xf]
        %v1149 = vlaneseq
        %v1150 = vshrl.u32 %v1149, 7
        %v1151 = vsub.s32 0, %v1150
        %v1152 = vrot.slane %v1147, %v1151
        %v1153 = vlaneseq
        %v1154 = vshrl.u32 %v1153, 7
        %v1155 = vsub.s32 1, %v1154
        %v1156 = vrot.slane %v1147, %v1155
        %v1157 = vlaneseq
        %v1158 = vshrl.u32 %v1157, 7
        %v1159 = vsub.s32 2, %v1158
        %v1160 = vrot.slane %v1147, %v1159
        %v1161 = vlaneseq
        %v1162 = vshrl.u32 %v1161, 7
        %v1163 = vsub.s32 3, %v1162
        %v1164 = vrot.slane %v1147, %v1163
        %v1169 = vmul.f32 %v470, %v1152
        %v1170 = vmul.f32 %v469, %v1156
        %v1171 = vmul.f32 %v468, %v1160
        %v1172 = vmul.f32 %v471, %v1164
        %v1173 = vpack.c.bf16 %v1169, %v1169
        %v1174 = vpack.c.bf16 %v1170, %v1170
        %v1175 = vpack.c.bf16 %v1171, %v1171
        %v1176 = vpack.c.bf16 %v1172, %v1172
        %s1177 = scalar_lea.vmem [#allocation5], 96
        %v1178 = vld [vmem:[%s1177] ss:$8 sm:$0xf]
        %v1180 = vlaneseq
        %v1181 = vshrl.u32 %v1180, 7
        %v1182 = vsub.s32 0, %v1181
        %v1183 = vrot.slane %v1178, %v1182
        %v1184 = vlaneseq
        %v1185 = vshrl.u32 %v1184, 7
        %v1186 = vsub.s32 1, %v1185
        %v1187 = vrot.slane %v1178, %v1186
        %v1188 = vlaneseq
        %v1189 = vshrl.u32 %v1188, 7
        %v1190 = vsub.s32 2, %v1189
        %v1191 = vrot.slane %v1178, %v1190
        %v1192 = vlaneseq
        %v1193 = vshrl.u32 %v1192, 7
        %v1194 = vsub.s32 3, %v1193
        %v1195 = vrot.slane %v1178, %v1194
        %v1200 = vmul.f32 %v514, %v1183
        %v1201 = vmul.f32 %v513, %v1187
        %v1202 = vmul.f32 %v512, %v1191
        %v1203 = vmul.f32 %v515, %v1195
        %v1204 = vpack.c.bf16 %v1200, %v1200
        %v1205 = vpack.c.bf16 %v1201, %v1201
        %v1206 = vpack.c.bf16 %v1202, %v1202
        %v1207 = vpack.c.bf16 %v1203, %v1203
        %s1208 = scalar_lea.vmem [#allocation5], 97
        %v1209 = vld [vmem:[%s1208] ss:$8 sm:$0xf]
        %v1211 = vlaneseq
        %v1212 = vshrl.u32 %v1211, 7
        %v1213 = vsub.s32 0, %v1212
        %v1214 = vrot.slane %v1209, %v1213
        %v1215 = vlaneseq
        %v1216 = vshrl.u32 %v1215, 7
        %v1217 = vsub.s32 1, %v1216
        %v1218 = vrot.slane %v1209, %v1217
        %v1219 = vlaneseq
        %v1220 = vshrl.u32 %v1219, 7
        %v1221 = vsub.s32 2, %v1220
        %v1222 = vrot.slane %v1209, %v1221
        %v1223 = vlaneseq
        %v1224 = vshrl.u32 %v1223, 7
        %v1225 = vsub.s32 3, %v1224
        %v1226 = vrot.slane %v1209, %v1225
        %v1231 = vmul.f32 %v558, %v1214
        %v1232 = vmul.f32 %v557, %v1218
        %v1233 = vmul.f32 %v556, %v1222
        %v1234 = vmul.f32 %v559, %v1226
        %v1235 = vpack.c.bf16 %v1231, %v1231
        %v1236 = vpack.c.bf16 %v1232, %v1232
        %v1237 = vpack.c.bf16 %v1233, %v1233
        %v1238 = vpack.c.bf16 %v1234, %v1234
        %s1239 = scalar_lea.vmem [#allocation5], 98
        %v1240 = vld [vmem:[%s1239] ss:$8 sm:$0xf]
        %v1242 = vlaneseq
        %v1243 = vshrl.u32 %v1242, 7
        %v1244 = vsub.s32 0, %v1243
        %v1245 = vrot.slane %v1240, %v1244
        %v1246 = vlaneseq
        %v1247 = vshrl.u32 %v1246, 7
        %v1248 = vsub.s32 1, %v1247
        %v1249 = vrot.slane %v1240, %v1248
        %v1250 = vlaneseq
        %v1251 = vshrl.u32 %v1250, 7
        %v1252 = vsub.s32 2, %v1251
        %v1253 = vrot.slane %v1240, %v1252
        %v1254 = vlaneseq
        %v1255 = vshrl.u32 %v1254, 7
        %v1256 = vsub.s32 3, %v1255
        %v1257 = vrot.slane %v1240, %v1256
        %v1262 = vmul.f32 %v602, %v1245
        %v1263 = vmul.f32 %v601, %v1249
        %v1264 = vmul.f32 %v600, %v1253
        %v1265 = vmul.f32 %v603, %v1257
        %v1266 = vpack.c.bf16 %v1262, %v1262
        %v1267 = vpack.c.bf16 %v1263, %v1263
        %v1268 = vpack.c.bf16 %v1264, %v1264
        %v1269 = vpack.c.bf16 %v1265, %v1265
        %v1274 = vrot.slane %v323, 6
        %v1275 = vrot.slane %v324, 6
        %v1276 = vrot.slane %v325, 6
        %v1277 = vrot.slane %v326, 6
        %v1282 = vrot.slane %v367, 4
        %v1283 = vrot.slane %v368, 4
        %v1284 = vrot.slane %v369, 4
        %v1285 = vrot.slane %v370, 4
        %v1290 = vrot.slane %v411, 2
        %v1291 = vrot.slane %v412, 2
        %v1292 = vrot.slane %v413, 2
        %v1293 = vrot.slane %v414, 2
        %v1298 = vrot.slane %v499, 6
        %v1299 = vrot.slane %v500, 6
        %v1300 = vrot.slane %v501, 6
        %v1301 = vrot.slane %v502, 6
        %v1306 = vrot.slane %v543, 4
        %v1307 = vrot.slane %v544, 4
        %v1308 = vrot.slane %v545, 4
        %v1309 = vrot.slane %v546, 4
        %v1314 = vrot.slane %v587, 2
        %v1315 = vrot.slane %v588, 2
        %v1316 = vrot.slane %v589, 2
        %v1317 = vrot.slane %v590, 2
        %v1322 = vrot.slane %v675, 6
        %v1323 = vrot.slane %v676, 6
        %v1324 = vrot.slane %v677, 6
        %v1325 = vrot.slane %v678, 6
        %v1330 = vrot.slane %v719, 4
        %v1331 = vrot.slane %v720, 4
        %v1332 = vrot.slane %v721, 4
        %v1333 = vrot.slane %v722, 4
        %v1338 = vrot.slane %v763, 2
        %v1339 = vrot.slane %v764, 2
        %v1340 = vrot.slane %v765, 2
        %v1341 = vrot.slane %v766, 2
        %v1346 = vrot.slane %v811, 6
        %v1347 = vrot.slane %v812, 6
        %v1348 = vrot.slane %v813, 6
        %v1349 = vrot.slane %v814, 6
        %v1354 = vrot.slane %v855, 4
        %v1355 = vrot.slane %v856, 4
        %v1356 = vrot.slane %v857, 4
        %v1357 = vrot.slane %v858, 4
        %v1362 = vrot.slane %v899, 2
        %v1363 = vrot.slane %v900, 2
        %v1364 = vrot.slane %v901, 2
        %v1365 = vrot.slane %v902, 2
        %vm1366 = vcmask 1041408
        %v1369 = vsel %vm1366, %v279, %v1274
        %v1372 = vsel %vm1366, %v280, %v1275
        %v1375 = vsel %vm1366, %v281, %v1276
        %v1378 = vsel %vm1366, %v282, %v1277
        %vm1379 = vcmask 1043456
        %v1381 = vsel %vm1379, %v1369, %v1282
        %v1383 = vsel %vm1379, %v1372, %v1283
        %v1385 = vsel %vm1379, %v1375, %v1284
        %v1387 = vsel %vm1379, %v1378, %v1285
        %vm1388 = vcmask 1045504
        %v1390 = vsel %vm1388, %v1381, %v1290
        %v1393 = vsel %vm1388, %v1383, %v1291
        %v1396 = vsel %vm1388, %v1385, %v1292
        %v1399 = vsel %vm1388, %v1387, %v1293
        %v1403 = vsel %vm1366, %v455, %v1298
        %v1406 = vsel %vm1366, %v456, %v1299
        %v1409 = vsel %vm1366, %v457, %v1300
        %v1412 = vsel %vm1366, %v458, %v1301
        %v1414 = vsel %vm1379, %v1403, %v1306
        %v1416 = vsel %vm1379, %v1406, %v1307
        %v1418 = vsel %vm1379, %v1409, %v1308
        %v1420 = vsel %vm1379, %v1412, %v1309
        %v1422 = vsel %vm1388, %v1414, %v1314
        %v1425 = vsel %vm1388, %v1416, %v1315
        %v1428 = vsel %vm1388, %v1418, %v1316
        %v1431 = vsel %vm1388, %v1420, %v1317
        %v1435 = vsel %vm1366, %v631, %v1322
        %v1438 = vsel %vm1366, %v632, %v1323
        %v1441 = vsel %vm1366, %v633, %v1324
        %v1444 = vsel %vm1366, %v634, %v1325
        %v1446 = vsel %vm1379, %v1435, %v1330
        %v1448 = vsel %vm1379, %v1438, %v1331
        %v1450 = vsel %vm1379, %v1441, %v1332
        %v1452 = vsel %vm1379, %v1444, %v1333
        %v1454 = vsel %vm1388, %v1446, %v1338
        %v1457 = vsel %vm1388, %v1448, %v1339
        %v1460 = vsel %vm1388, %v1450, %v1340
        %v1463 = vsel %vm1388, %v1452, %v1341
        %v1467 = vsel %vm1366, %v807, %v1346
        %v1470 = vsel %vm1366, %v808, %v1347
        %v1473 = vsel %vm1366, %v809, %v1348
        %v1476 = vsel %vm1366, %v810, %v1349
        %v1478 = vsel %vm1379, %v1467, %v1354
        %v1480 = vsel %vm1379, %v1470, %v1355
        %v1482 = vsel %vm1379, %v1473, %v1356
        %v1484 = vsel %vm1379, %v1476, %v1357
        %v1486 = vsel %vm1388, %v1478, %v1362
        %v1489 = vsel %vm1388, %v1480, %v1363
        %v1492 = vsel %vm1388, %v1482, %v1364
        %v1495 = vsel %vm1388, %v1484, %v1365
        %v1501 = vrot.slane %v987, 6
        %v1502 = vrot.slane %v988, 6
        %v1503 = vrot.slane %v989, 6
        %v1504 = vrot.slane %v990, 6
        %v1509 = vrot.slane %v1018, 4
        %v1510 = vrot.slane %v1019, 4
        %v1511 = vrot.slane %v1020, 4
        %v1512 = vrot.slane %v1021, 4
        %v1517 = vrot.slane %v1049, 2
        %v1518 = vrot.slane %v1050, 2
        %v1519 = vrot.slane %v1051, 2
        %v1520 = vrot.slane %v1052, 2
        %v1525 = vrot.slane %v1111, 6
        %v1526 = vrot.slane %v1112, 6
        %v1527 = vrot.slane %v1113, 6
        %v1528 = vrot.slane %v1114, 6
        %v1533 = vrot.slane %v1142, 4
        %v1534 = vrot.slane %v1143, 4
        %v1535 = vrot.slane %v1144, 4
        %v1536 = vrot.slane %v1145, 4
        %v1541 = vrot.slane %v1173, 2
        %v1542 = vrot.slane %v1174, 2
        %v1543 = vrot.slane %v1175, 2
        %v1544 = vrot.slane %v1176, 2
        %v1549 = vrot.slane %v1235, 6
        %v1550 = vrot.slane %v1236, 6
        %v1551 = vrot.slane %v1237, 6
        %v1552 = vrot.slane %v1238, 6
        %v1557 = vrot.slane %v1266, 4
        %v1558 = vrot.slane %v1267, 4
        %v1559 = vrot.slane %v1268, 4
        %v1560 = vrot.slane %v1269, 4
        %v1563 = vsel %vm1366, %v943, %v1501
        %v1566 = vsel %vm1366, %v944, %v1502
        %v1569 = vsel %vm1366, %v945, %v1503
        %v1572 = vsel %vm1366, %v946, %v1504
        %v1574 = vsel %vm1379, %v1563, %v1509
        %v1576 = vsel %vm1379, %v1566, %v1510
        %v1578 = vsel %vm1379, %v1569, %v1511
        %v1580 = vsel %vm1379, %v1572, %v1512
        %v1582 = vsel %vm1388, %v1574, %v1517
        %v1585 = vsel %vm1388, %v1576, %v1518
        %v1588 = vsel %vm1388, %v1578, %v1519
        %v1591 = vsel %vm1388, %v1580, %v1520
        %v1595 = vsel %vm1366, %v1080, %v1525
        %v1598 = vsel %vm1366, %v1081, %v1526
        %v1601 = vsel %vm1366, %v1082, %v1527
        %v1604 = vsel %vm1366, %v1083, %v1528
        %v1606 = vsel %vm1379, %v1595, %v1533
        %v1608 = vsel %vm1379, %v1598, %v1534
        %v1610 = vsel %vm1379, %v1601, %v1535
        %v1612 = vsel %vm1379, %v1604, %v1536
        %v1614 = vsel %vm1388, %v1606, %v1541
        %v1617 = vsel %vm1388, %v1608, %v1542
        %v1620 = vsel %vm1388, %v1610, %v1543
        %v1623 = vsel %vm1388, %v1612, %v1544
        %v1627 = vsel %vm1366, %v1204, %v1549
        %v1630 = vsel %vm1366, %v1205, %v1550
        %v1633 = vsel %vm1366, %v1206, %v1551
        %v1636 = vsel %vm1366, %v1207, %v1552
        %v1638 = vsel %vm1379, %v1627, %v1557
        %v1640 = vsel %vm1379, %v1630, %v1558
        %v1642 = vsel %vm1379, %v1633, %v1559
        %v1644 = vsel %vm1379, %v1636, %v1560
        %v1645 = vld [vmem:[%s2] sm:$0x3]
        %vm1646 = vcmask 883712
        %v1648 = vsel %vm1646, %v1645, 0
        %v1650 = vsel %vm1388, %v1638, 0
        %v1652 = vsel %vm1388, %v1640, 0
        %v1654 = vsel %vm1388, %v1642, 0
        %v1656 = vsel %vm1388, %v1644, 0
        %1658 = vmatprep.subr.bf16.mxu0 %v1393
        %1659 = vmatpush1.bf16.msra.mxu0 %v1390
        %1660 = vmatprep.subr.bf16.mxu0 %v1425
        %1661 = vmatpush1.bf16.msra.mxu0 %v1422
        %1662 = vmatprep.subr.bf16.mxu0 %v1457
        %1663 = vmatpush1.bf16.msra.mxu0 %v1454
        %1664 = vmatprep.subr.bf16.mxu0 %v1489
        %1665 = vmatpush1.bf16.msra.mxu0 %v1486
        %1666 = vmatprep.subr.bf16.mxu0 %v1585
        %1667 = vmatpush1.bf16.msra.mxu0 %v1582
        %1668 = vmatprep.subr.bf16.mxu0 %v1617
        %1669 = vmatpush1.bf16.msra.mxu0 %v1614
        %1670 = vmatprep.subr.bf16.mxu0 %v1652
        %1671 = vmatpush1.bf16.msra.mxu0 %v1650
        %1672 = vmatprep.subr.bf16.mxu0 0
        %1673 = vmatpush1.bf16.msra.mxu0 0
        %1674 = vmatprep.subr.bf16.mxu0 0
        %1675 = vmatpush1.bf16.msra.mxu0 0
        %1676 = vmatprep.subr.bf16.mxu0 0
        %1677 = vmatpush1.bf16.msra.mxu0 0
        %1678 = vmatprep.subr.bf16.mxu0 0
        %1679 = vmatpush1.bf16.msra.mxu0 0
        %1680 = vmatprep.subr.bf16.mxu0 0
        %1681 = vmatpush1.bf16.msra.mxu0 0
        %1682 = vmatprep.subr.bf16.mxu0 0
        %1683 = vmatpush1.bf16.msra.mxu0 0
        %1684 = vmatprep.subr.bf16.mxu0 0
        %1685 = vmatpush1.bf16.msra.mxu0 0
        %1686 = vmatprep.subr.bf16.mxu0 0
        %1687 = vmatpush1.bf16.msra.mxu0 0
        %1688 = vmatprep.subr.bf16.mxu0 0
        %1689 = vmatpush1.bf16.msra.mxu0 0
        %1690 = vmatprep.mubr.bf16.mxu0 0
        %1691 = vmatmul.mubr.bf16.gmra.mrb[0].mxu0 %v1648
        %v1692 = vpop.f32.mrb[0].mxu0
        %v1693 = vadd.f32 0.0, %v1692
        %v1694 = vpop.f32.mrb[0].mxu0
        %v1695 = vadd.f32 0.0, %v1694
        %v1696 = vpop.f32.mrb[0].mxu0
        %v1697 = vpop.f32.mrb[0].mxu0
        %1698 = vdwg.mxu0
        %1699 = vmatprep.subr.bf16.mxu0 %v1399
        %1700 = vmatpush1.bf16.msra.mxu0 %v1396
        %1701 = vmatprep.subr.bf16.mxu0 %v1431
        %1702 = vmatpush1.bf16.msra.mxu0 %v1428
        %1703 = vmatprep.subr.bf16.mxu0 %v1463
        %1704 = vmatpush1.bf16.msra.mxu0 %v1460
        %1705 = vmatprep.subr.bf16.mxu0 %v1495
        %1706 = vmatpush1.bf16.msra.mxu0 %v1492
        %1707 = vmatprep.subr.bf16.mxu0 %v1591
        %1708 = vmatpush1.bf16.msra.mxu0 %v1588
        %1709 = vmatprep.subr.bf16.mxu0 %v1623
        %1710 = vmatpush1.bf16.msra.mxu0 %v1620
        %1711 = vmatprep.subr.bf16.mxu0 %v1656
        %1712 = vmatpush1.bf16.msra.mxu0 %v1654
        %1713 = vmatprep.subr.bf16.mxu0 0
        %1714 = vmatpush1.bf16.msra.mxu0 0
        %1715 = vmatprep.subr.bf16.mxu0 0
        %1716 = vmatpush1.bf16.msra.mxu0 0
        %1717 = vmatprep.subr.bf16.mxu0 0
        %1718 = vmatpush1.bf16.msra.mxu0 0
        %1719 = vmatprep.subr.bf16.mxu0 0
        %1720 = vmatpush1.bf16.msra.mxu0 0
        %1721 = vmatprep.subr.bf16.mxu0 0
        %1722 = vmatpush1.bf16.msra.mxu0 0
        %1723 = vmatprep.subr.bf16.mxu0 0
        %1724 = vmatpush1.bf16.msra.mxu0 0
        %1725 = vmatprep.subr.bf16.mxu0 0
        %1726 = vmatpush1.bf16.msra.mxu0 0
        %1727 = vmatprep.subr.bf16.mxu0 0
        %1728 = vmatpush1.bf16.msra.mxu0 0
        %1729 = vmatprep.subr.bf16.mxu0 0
        %1730 = vmatpush1.bf16.msra.mxu0 0
        %1731 = vmatprep.mubr.bf16.mxu0 0
        %1732 = vmatmul.mubr.bf16.gmra.mrb[0].mxu0 %v1648
        %v1733 = vpop.f32.mrb[0].mxu0
        %v1734 = vadd.f32 0.0, %v1733
        %v1735 = vpop.f32.mrb[0].mxu0
        %v1736 = vadd.f32 0.0, %v1735
        %v1737 = vpop.f32.mrb[0].mxu0
        %v1738 = vpop.f32.mrb[0].mxu0
        %1739 = vdwg.mxu0
        %v1740 = vsel %vm1379, %v1693, 0.0
        %v1741 = vsel %vm1379, %v1695, 0.0
        %v1742 = vadd.f32 %v1740, %v1741
        %v1743 = vsel %vm1379, %v1734, 0.0
        %v1744 = vadd.f32 %v1742, %v1743
        %v1745 = vsel %vm1379, %v1736, 0.0
        %v1746 = vadd.f32 %v1744, %v1745
        %1747 = vadd.xlane.f32.xlu0 %v1746
        %v1748 = vpop.xlane.xlu0 %1747
        %v1749 = vmul.f32 %v1693, %v1693
        %v1750 = vmul.f32 %v1695, %v1695
        %v1751 = vmul.f32 %v1734, %v1734
        %v1752 = vmul.f32 %v1736, %v1736
        %v1753 = vsel %vm1379, %v1749, 0.0
        %v1754 = vsel %vm1379, %v1750, 0.0
        %v1755 = vadd.f32 %v1753, %v1754
        %v1756 = vsel %vm1379, %v1751, 0.0
        %v1757 = vadd.f32 %v1755, %v1756
        %v1758 = vsel %vm1379, %v1752, 0.0
        %v1759 = vadd.f32 %v1757, %v1758
        %1760 = vadd.xlane.f32.xlu0 %v1759
        %v1761 = vpop.xlane.xlu0 %1760
        %v1762 = vmul.f32 %v1748, 0.001953125
        %v1763 = vmul.f32 %v1761, 0.001953125
        %v1764 = vmul.f32 %v1762, %v1762
        %v1765 = vsub.f32 %v1763, %v1764
        %v1766 = vmax.f32 %v1765, 0.0
        %v1767 = vsub.f32 %v1693, %v1762
        %v1768 = vsub.f32 %v1695, %v1762
        %v1769 = vsub.f32 %v1734, %v1762
        %v1770 = vsub.f32 %v1736, %v1762
        %v1771 = vadd.f32 %v1766, 1e-05
        %v1772 = vrsqrt.pop %v1771
        %v1773 = vmul.f32 %v1767, %v1772
        %v1774 = vmul.f32 %v1768, %v1772
        %v1775 = vmul.f32 %v1769, %v1772
        %v1776 = vmul.f32 %v1770, %v1772
        %v1777 = vmax.f32 %v1773, 0.0
        %v1778 = vmax.f32 %v1774, 0.0
        %v1779 = vmax.f32 %v1775, 0.0
        %v1780 = vmax.f32 %v1776, 0.0
        %1781 = vrot.lane.b32.xlu0 %v1777, 73
        %v1782 = vpop.permute.xlu0 %1781
        %1783 = vrot.lane.b32.xlu0 %v1778, 73
        %v1784 = vpop.permute.xlu0 %1783
        %1785 = vrot.lane.b32.xlu0 %v1779, 73
        %v1786 = vpop.permute.xlu0 %1785
        %1787 = vrot.lane.b32.xlu0 %v1780, 73
        %v1788 = vpop.permute.xlu0 %1787
        %v1789 = vsel %vm248, %v1786, %v1788
        %v1790 = vsel %vm248, %v1784, %v1786
        %v1791 = vsel %vm248, %v1782, %v1784
        %v1792 = vsel %vm248, %v1788, %v1782
        %v1793 = vmul.f32 %v1792, %v258
        %v1794 = vmul.f32 %v1791, %v262
        %v1795 = vmul.f32 %v1790, %v266
        %v1796 = vmul.f32 %v1789, %v270
        %v1797 = vpack.c.bf16 %v1793, %v1793
        %v1798 = vpack.c.bf16 %v1794, %v1794
        %v1799 = vpack.c.bf16 %v1795, %v1795
        %v1800 = vpack.c.bf16 %v1796, %v1796
        %1801 = vrot.lane.b32.xlu0 %v1777, 72
        %v1802 = vpop.permute.xlu0 %1801
        %1803 = vrot.lane.b32.xlu0 %v1778, 72
        %v1804 = vpop.permute.xlu0 %1803
        %1805 = vrot.lane.b32.xlu0 %v1779, 72
        %v1806 = vpop.permute.xlu0 %1805
        %1807 = vrot.lane.b32.xlu0 %v1780, 72
        %v1808 = vpop.permute.xlu0 %1807
        %v1809 = vsel %vm291, %v1806, %v1808
        %v1810 = vsel %vm291, %v1804, %v1806
        %v1811 = vsel %vm291, %v1802, %v1804
        %v1812 = vsel %vm291, %v1808, %v1802
        %v1813 = vmul.f32 %v1812, %v302
        %v1814 = vmul.f32 %v1811, %v306
        %v1815 = vmul.f32 %v1810, %v310
        %v1816 = vmul.f32 %v1809, %v314
        %v1817 = vpack.c.bf16 %v1813, %v1813
        %v1818 = vpack.c.bf16 %v1814, %v1814
        %v1819 = vpack.c.bf16 %v1815, %v1815
        %v1820 = vpack.c.bf16 %v1816, %v1816
        %1821 = vrot.lane.b32.xlu0 %v1777, 71
        %v1822 = vpop.permute.xlu0 %1821
        %1823 = vrot.lane.b32.xlu0 %v1778, 71
        %v1824 = vpop.permute.xlu0 %1823
        %1825 = vrot.lane.b32.xlu0 %v1779, 71
        %v1826 = vpop.permute.xlu0 %1825
        %1827 = vrot.lane.b32.xlu0 %v1780, 71
        %v1828 = vpop.permute.xlu0 %1827
        %v1829 = vsel %vm335, %v1826, %v1828
        %v1830 = vsel %vm335, %v1824, %v1826
        %v1831 = vsel %vm335, %v1822, %v1824
        %v1832 = vsel %vm335, %v1828, %v1822
        %v1833 = vmul.f32 %v1832, %v346
        %v1834 = vmul.f32 %v1831, %v350
        %v1835 = vmul.f32 %v1830, %v354
        %v1836 = vmul.f32 %v1829, %v358
        %v1837 = vpack.c.bf16 %v1833, %v1833
        %v1838 = vpack.c.bf16 %v1834, %v1834
        %v1839 = vpack.c.bf16 %v1835, %v1835
        %v1840 = vpack.c.bf16 %v1836, %v1836
        %1841 = vrot.lane.b32.xlu0 %v1777, 65
        %v1842 = vpop.permute.xlu0 %1841
        %1843 = vrot.lane.b32.xlu0 %v1778, 65
        %v1844 = vpop.permute.xlu0 %1843
        %1845 = vrot.lane.b32.xlu0 %v1779, 65
        %v1846 = vpop.permute.xlu0 %1845
        %1847 = vrot.lane.b32.xlu0 %v1780, 65
        %v1848 = vpop.permute.xlu0 %1847
        %v1849 = vsel %vm379, %v1846, %v1848
        %v1850 = vsel %vm379, %v1844, %v1846
        %v1851 = vsel %vm379, %v1842, %v1844
        %v1852 = vsel %vm379, %v1848, %v1842
        %v1853 = vmul.f32 %v1852, %v390
        %v1854 = vmul.f32 %v1851, %v394
        %v1855 = vmul.f32 %v1850, %v398
        %v1856 = vmul.f32 %v1849, %v402
        %v1857 = vpack.c.bf16 %v1853, %v1853
        %v1858 = vpack.c.bf16 %v1854, %v1854
        %v1859 = vpack.c.bf16 %v1855, %v1855
        %v1860 = vpack.c.bf16 %v1856, %v1856
        %1861 = vrot.lane.b32.xlu0 %v1777, 64
        %v1862 = vpop.permute.xlu0 %1861
        %1863 = vrot.lane.b32.xlu0 %v1778, 64
        %v1864 = vpop.permute.xlu0 %1863
        %1865 = vrot.lane.b32.xlu0 %v1779, 64
        %v1866 = vpop.permute.xlu0 %1865
        %1867 = vrot.lane.b32.xlu0 %v1780, 64
        %v1868 = vpop.permute.xlu0 %1867
        %v1869 = vsel %vm423, %v1866, %v1868
        %v1870 = vsel %vm423, %v1864, %v1866
        %v1871 = vsel %vm423, %v1862, %v1864
        %v1872 = vsel %vm423, %v1868, %v1862
        %v1873 = vmul.f32 %v1872, %v434
        %v1874 = vmul.f32 %v1871, %v438
        %v1875 = vmul.f32 %v1870, %v442
        %v1876 = vmul.f32 %v1869, %v446
        %v1877 = vpack.c.bf16 %v1873, %v1873
        %v1878 = vpack.c.bf16 %v1874, %v1874
        %v1879 = vpack.c.bf16 %v1875, %v1875
        %v1880 = vpack.c.bf16 %v1876, %v1876
        %1881 = vrot.lane.b32.xlu0 %v1777, 63
        %v1882 = vpop.permute.xlu0 %1881
        %1883 = vrot.lane.b32.xlu0 %v1778, 63
        %v1884 = vpop.permute.xlu0 %1883
        %1885 = vrot.lane.b32.xlu0 %v1779, 63
        %v1886 = vpop.permute.xlu0 %1885
        %1887 = vrot.lane.b32.xlu0 %v1780, 63
        %v1888 = vpop.permute.xlu0 %1887
        %v1889 = vsel %vm467, %v1886, %v1888
        %v1890 = vsel %vm467, %v1884, %v1886
        %v1891 = vsel %vm467, %v1882, %v1884
        %v1892 = vsel %vm467, %v1888, %v1882
        %v1893 = vmul.f32 %v1892, %v478
        %v1894 = vmul.f32 %v1891, %v482
        %v1895 = vmul.f32 %v1890, %v486
        %v1896 = vmul.f32 %v1889, %v490
        %v1897 = vpack.c.bf16 %v1893, %v1893
        %v1898 = vpack.c.bf16 %v1894, %v1894
        %v1899 = vpack.c.bf16 %v1895, %v1895
        %v1900 = vpack.c.bf16 %v1896, %v1896
        %1901 = vrot.lane.b32.xlu0 %v1777, 57
        %v1902 = vpop.permute.xlu0 %1901
        %1903 = vrot.lane.b32.xlu0 %v1778, 57
        %v1904 = vpop.permute.xlu0 %1903
        %1905 = vrot.lane.b32.xlu0 %v1779, 57
        %v1906 = vpop.permute.xlu0 %1905
        %1907 = vrot.lane.b32.xlu0 %v1780, 57
        %v1908 = vpop.permute.xlu0 %1907
        %v1909 = vsel %vm511, %v1906, %v1908
        %v1910 = vsel %vm511, %v1904, %v1906
        %v1911 = vsel %vm511, %v1902, %v1904
        %v1912 = vsel %vm511, %v1908, %v1902
        %v1913 = vmul.f32 %v1912, %v522
        %v1914 = vmul.f32 %v1911, %v526
        %v1915 = vmul.f32 %v1910, %v530
        %v1916 = vmul.f32 %v1909, %v534
        %v1917 = vpack.c.bf16 %v1913, %v1913
        %v1918 = vpack.c.bf16 %v1914, %v1914
        %v1919 = vpack.c.bf16 %v1915, %v1915
        %v1920 = vpack.c.bf16 %v1916, %v1916
        %1921 = vrot.lane.b32.xlu0 %v1777, 56
        %v1922 = vpop.permute.xlu0 %1921
        %1923 = vrot.lane.b32.xlu0 %v1778, 56
        %v1924 = vpop.permute.xlu0 %1923
        %1925 = vrot.lane.b32.xlu0 %v1779, 56
        %v1926 = vpop.permute.xlu0 %1925
        %1927 = vrot.lane.b32.xlu0 %v1780, 56
        %v1928 = vpop.permute.xlu0 %1927
        %v1929 = vsel %vm555, %v1926, %v1928
        %v1930 = vsel %vm555, %v1924, %v1926
        %v1931 = vsel %vm555, %v1922, %v1924
        %v1932 = vsel %vm555, %v1928, %v1922
        %v1933 = vmul.f32 %v1932, %v566
        %v1934 = vmul.f32 %v1931, %v570
        %v1935 = vmul.f32 %v1930, %v574
        %v1936 = vmul.f32 %v1929, %v578
        %v1937 = vpack.c.bf16 %v1933, %v1933
        %v1938 = vpack.c.bf16 %v1934, %v1934
        %v1939 = vpack.c.bf16 %v1935, %v1935
        %v1940 = vpack.c.bf16 %v1936, %v1936
        %1941 = vrot.lane.b32.xlu0 %v1777, 55
        %v1942 = vpop.permute.xlu0 %1941
        %1943 = vrot.lane.b32.xlu0 %v1778, 55
        %v1944 = vpop.permute.xlu0 %1943
        %1945 = vrot.lane.b32.xlu0 %v1779, 55
        %v1946 = vpop.permute.xlu0 %1945
        %1947 = vrot.lane.b32.xlu0 %v1780, 55
        %v1948 = vpop.permute.xlu0 %1947
        %v1949 = vsel %vm599, %v1946, %v1948
        %v1950 = vsel %vm599, %v1944, %v1946
        %v1951 = vsel %vm599, %v1942, %v1944
        %v1952 = vsel %vm599, %v1948, %v1942
        %v1953 = vmul.f32 %v1952, %v610
        %v1954 = vmul.f32 %v1951, %v614
        %v1955 = vmul.f32 %v1950, %v618
        %v1956 = vmul.f32 %v1949, %v622
        %v1957 = vpack.c.bf16 %v1953, %v1953
        %v1958 = vpack.c.bf16 %v1954, %v1954
        %v1959 = vpack.c.bf16 %v1955, %v1955
        %v1960 = vpack.c.bf16 %v1956, %v1956
        %1961 = vrot.lane.b32.xlu0 %v1777, 9
        %v1962 = vpop.permute.xlu0 %1961
        %1963 = vrot.lane.b32.xlu0 %v1778, 9
        %v1964 = vpop.permute.xlu0 %1963
        %1965 = vrot.lane.b32.xlu0 %v1779, 9
        %v1966 = vpop.permute.xlu0 %1965
        %1967 = vrot.lane.b32.xlu0 %v1780, 9
        %v1968 = vpop.permute.xlu0 %1967
        %v1969 = vsel %vm643, %v1966, %v1968
        %v1970 = vsel %vm643, %v1964, %v1966
        %v1971 = vsel %vm643, %v1962, %v1964
        %v1972 = vsel %vm643, %v1968, %v1962
        %v1973 = vmul.f32 %v1972, %v654
        %v1974 = vmul.f32 %v1971, %v658
        %v1975 = vmul.f32 %v1970, %v662
        %v1976 = vmul.f32 %v1969, %v666
        %v1977 = vpack.c.bf16 %v1973, %v1973
        %v1978 = vpack.c.bf16 %v1974, %v1974
        %v1979 = vpack.c.bf16 %v1975, %v1975
        %v1980 = vpack.c.bf16 %v1976, %v1976
        %1981 = vrot.lane.b32.xlu0 %v1777, 8
        %v1982 = vpop.permute.xlu0 %1981
        %1983 = vrot.lane.b32.xlu0 %v1778, 8
        %v1984 = vpop.permute.xlu0 %1983
        %1985 = vrot.lane.b32.xlu0 %v1779, 8
        %v1986 = vpop.permute.xlu0 %1985
        %1987 = vrot.lane.b32.xlu0 %v1780, 8
        %v1988 = vpop.permute.xlu0 %1987
        %v1989 = vsel %vm687, %v1986, %v1988
        %v1990 = vsel %vm687, %v1984, %v1986
        %v1991 = vsel %vm687, %v1982, %v1984
        %v1992 = vsel %vm687, %v1988, %v1982
        %v1993 = vmul.f32 %v1992, %v698
        %v1994 = vmul.f32 %v1991, %v702
        %v1995 = vmul.f32 %v1990, %v706
        %v1996 = vmul.f32 %v1989, %v710
        %v1997 = vpack.c.bf16 %v1993, %v1993
        %v1998 = vpack.c.bf16 %v1994, %v1994
        %v1999 = vpack.c.bf16 %v1995, %v1995
        %v2000 = vpack.c.bf16 %v1996, %v1996
        %2001 = vrot.lane.b32.xlu0 %v1777, 7
        %v2002 = vpop.permute.xlu0 %2001
        %2003 = vrot.lane.b32.xlu0 %v1778, 7
        %v2004 = vpop.permute.xlu0 %2003
        %2005 = vrot.lane.b32.xlu0 %v1779, 7
        %v2006 = vpop.permute.xlu0 %2005
        %2007 = vrot.lane.b32.xlu0 %v1780, 7
        %v2008 = vpop.permute.xlu0 %2007
        %v2009 = vsel %vm731, %v2006, %v2008
        %v2010 = vsel %vm731, %v2004, %v2006
        %v2011 = vsel %vm731, %v2002, %v2004
        %v2012 = vsel %vm731, %v2008, %v2002
        %v2013 = vmul.f32 %v2012, %v742
        %v2014 = vmul.f32 %v2011, %v746
        %v2015 = vmul.f32 %v2010, %v750
        %v2016 = vmul.f32 %v2009, %v754
        %v2017 = vpack.c.bf16 %v2013, %v2013
        %v2018 = vpack.c.bf16 %v2014, %v2014
        %v2019 = vpack.c.bf16 %v2015, %v2015
        %v2020 = vpack.c.bf16 %v2016, %v2016
        %2021 = vrot.lane.b32.xlu0 %v1777, 1
        %v2022 = vpop.permute.xlu0 %2021
        %2023 = vrot.lane.b32.xlu0 %v1778, 1
        %v2024 = vpop.permute.xlu0 %2023
        %2025 = vrot.lane.b32.xlu0 %v1779, 1
        %v2026 = vpop.permute.xlu0 %2025
        %2027 = vrot.lane.b32.xlu0 %v1780, 1
        %v2028 = vpop.permute.xlu0 %2027
        %v2029 = vsel %vm775, %v2026, %v2028
        %v2030 = vsel %vm775, %v2024, %v2026
        %v2031 = vsel %vm775, %v2022, %v2024
        %v2032 = vsel %vm775, %v2028, %v2022
        %v2033 = vmul.f32 %v2032, %v786
        %v2034 = vmul.f32 %v2031, %v790
        %v2035 = vmul.f32 %v2030, %v794
        %v2036 = vmul.f32 %v2029, %v798
        %v2037 = vpack.c.bf16 %v2033, %v2033
        %v2038 = vpack.c.bf16 %v2034, %v2034
        %v2039 = vpack.c.bf16 %v2035, %v2035
        %v2040 = vpack.c.bf16 %v2036, %v2036
        %v2041 = vpack.c.bf16 %v1777, %v1777
        %v2042 = vpack.c.bf16 %v1778, %v1778
        %v2043 = vpack.c.bf16 %v1779, %v1779
        %v2044 = vpack.c.bf16 %v1780, %v1780
        %2045 = vrot.lane.b32.xlu0 %v1777, 127
        %v2046 = vpop.permute.xlu0 %2045
        %2047 = vrot.lane.b32.xlu0 %v1778, 127
        %v2048 = vpop.permute.xlu0 %2047
        %2049 = vrot.lane.b32.xlu0 %v1779, 127
        %v2050 = vpop.permute.xlu0 %2049
        %2051 = vrot.lane.b32.xlu0 %v1780, 127
        %v2052 = vpop.permute.xlu0 %2051
        %v2053 = vsel %vm823, %v2050, %v2052
        %v2054 = vsel %vm823, %v2048, %v2050
        %v2055 = vsel %vm823, %v2046, %v2048
        %v2056 = vsel %vm823, %v2052, %v2046
        %v2057 = vmul.f32 %v2055, %v834
        %v2058 = vmul.f32 %v2054, %v838
        %v2059 = vmul.f32 %v2053, %v842
        %v2060 = vmul.f32 %v2056, %v846
        %v2061 = vpack.c.bf16 %v2057, %v2057
        %v2062 = vpack.c.bf16 %v2058, %v2058
        %v2063 = vpack.c.bf16 %v2059, %v2059
        %v2064 = vpack.c.bf16 %v2060, %v2060
        %2065 = vrot.lane.b32.xlu0 %v1777, 121
        %v2066 = vpop.permute.xlu0 %2065
        %2067 = vrot.lane.b32.xlu0 %v1778, 121
        %v2068 = vpop.permute.xlu0 %2067
        %2069 = vrot.lane.b32.xlu0 %v1779, 121
        %v2070 = vpop.permute.xlu0 %2069
        %2071 = vrot.lane.b32.xlu0 %v1780, 121
        %v2072 = vpop.permute.xlu0 %2071
        %v2073 = vsel %vm867, %v2070, %v2072
        %v2074 = vsel %vm867, %v2068, %v2070
        %v2075 = vsel %vm867, %v2066, %v2068
        %v2076 = vsel %vm867, %v2072, %v2066
        %v2077 = vmul.f32 %v2075, %v878
        %v2078 = vmul.f32 %v2074, %v882
        %v2079 = vmul.f32 %v2073, %v886
        %v2080 = vmul.f32 %v2076, %v890
        %v2081 = vpack.c.bf16 %v2077, %v2077
        %v2082 = vpack.c.bf16 %v2078, %v2078
        %v2083 = vpack.c.bf16 %v2079, %v2079
        %v2084 = vpack.c.bf16 %v2080, %v2080
        %2085 = vrot.lane.b32.xlu0 %v1777, 120
        %v2086 = vpop.permute.xlu0 %2085
        %2087 = vrot.lane.b32.xlu0 %v1778, 120
        %v2088 = vpop.permute.xlu0 %2087
        %2089 = vrot.lane.b32.xlu0 %v1779, 120
        %v2090 = vpop.permute.xlu0 %2089
        %2091 = vrot.lane.b32.xlu0 %v1780, 120
        %v2092 = vpop.permute.xlu0 %2091
        %v2093 = vsel %vm911, %v2090, %v2092
        %v2094 = vsel %vm911, %v2088, %v2090
        %v2095 = vsel %vm911, %v2086, %v2088
        %v2096 = vsel %vm911, %v2092, %v2086
        %v2097 = vmul.f32 %v2095, %v922
        %v2098 = vmul.f32 %v2094, %v926
        %v2099 = vmul.f32 %v2093, %v930
        %v2100 = vmul.f32 %v2096, %v934
        %v2101 = vpack.c.bf16 %v2097, %v2097
        %v2102 = vpack.c.bf16 %v2098, %v2098
        %v2103 = vpack.c.bf16 %v2099, %v2099
        %v2104 = vpack.c.bf16 %v2100, %v2100
        %2105 = vrot.lane.b32.xlu0 %v1777, 119
        %v2106 = vpop.permute.xlu0 %2105
        %2107 = vrot.lane.b32.xlu0 %v1778, 119
        %v2108 = vpop.permute.xlu0 %2107
        %2109 = vrot.lane.b32.xlu0 %v1779, 119
        %v2110 = vpop.permute.xlu0 %2109
        %2111 = vrot.lane.b32.xlu0 %v1780, 119
        %v2112 = vpop.permute.xlu0 %2111
        %v2113 = vsel %vm955, %v2110, %v2112
        %v2114 = vsel %vm955, %v2108, %v2110
        %v2115 = vsel %vm955, %v2106, %v2108
        %v2116 = vsel %vm955, %v2112, %v2106
        %v2117 = vmul.f32 %v2115, %v966
        %v2118 = vmul.f32 %v2114, %v970
        %v2119 = vmul.f32 %v2113, %v974
        %v2120 = vmul.f32 %v2116, %v978
        %v2121 = vpack.c.bf16 %v2117, %v2117
        %v2122 = vpack.c.bf16 %v2118, %v2118
        %v2123 = vpack.c.bf16 %v2119, %v2119
        %v2124 = vpack.c.bf16 %v2120, %v2120
        %v2125 = vmul.f32 %v1791, %v997
        %v2126 = vmul.f32 %v1790, %v1001
        %v2127 = vmul.f32 %v1789, %v1005
        %v2128 = vmul.f32 %v1792, %v1009
        %v2129 = vpack.c.bf16 %v2125, %v2125
        %v2130 = vpack.c.bf16 %v2126, %v2126
        %v2131 = vpack.c.bf16 %v2127, %v2127
        %v2132 = vpack.c.bf16 %v2128, %v2128
        %v2133 = vmul.f32 %v1811, %v1028
        %v2134 = vmul.f32 %v1810, %v1032
        %v2135 = vmul.f32 %v1809, %v1036
        %v2136 = vmul.f32 %v1812, %v1040
        %v2137 = vpack.c.bf16 %v2133, %v2133
        %v2138 = vpack.c.bf16 %v2134, %v2134
        %v2139 = vpack.c.bf16 %v2135, %v2135
        %v2140 = vpack.c.bf16 %v2136, %v2136
        %v2141 = vmul.f32 %v1831, %v1059
        %v2142 = vmul.f32 %v1830, %v1063
        %v2143 = vmul.f32 %v1829, %v1067
        %v2144 = vmul.f32 %v1832, %v1071
        %v2145 = vpack.c.bf16 %v2141, %v2141
        %v2146 = vpack.c.bf16 %v2142, %v2142
        %v2147 = vpack.c.bf16 %v2143, %v2143
        %v2148 = vpack.c.bf16 %v2144, %v2144
        %v2149 = vmul.f32 %v1851, %v1090
        %v2150 = vmul.f32 %v1850, %v1094
        %v2151 = vmul.f32 %v1849, %v1098
        %v2152 = vmul.f32 %v1852, %v1102
        %v2153 = vpack.c.bf16 %v2149, %v2149
        %v2154 = vpack.c.bf16 %v2150, %v2150
        %v2155 = vpack.c.bf16 %v2151, %v2151
        %v2156 = vpack.c.bf16 %v2152, %v2152
        %v2157 = vmul.f32 %v1871, %v1121
        %v2158 = vmul.f32 %v1870, %v1125
        %v2159 = vmul.f32 %v1869, %v1129
        %v2160 = vmul.f32 %v1872, %v1133
        %v2161 = vpack.c.bf16 %v2157, %v2157
        %v2162 = vpack.c.bf16 %v2158, %v2158
        %v2163 = vpack.c.bf16 %v2159, %v2159
        %v2164 = vpack.c.bf16 %v2160, %v2160
        %v2165 = vmul.f32 %v1891, %v1152
        %v2166 = vmul.f32 %v1890, %v1156
        %v2167 = vmul.f32 %v1889, %v1160
        %v2168 = vmul.f32 %v1892, %v1164
        %v2169 = vpack.c.bf16 %v2165, %v2165
        %v2170 = vpack.c.bf16 %v2166, %v2166
        %v2171 = vpack.c.bf16 %v2167, %v2167
        %v2172 = vpack.c.bf16 %v2168, %v2168
        %v2173 = vmul.f32 %v1911, %v1183
        %v2174 = vmul.f32 %v1910, %v1187
        %v2175 = vmul.f32 %v1909, %v1191
        %v2176 = vmul.f32 %v1912, %v1195
        %v2177 = vpack.c.bf16 %v2173, %v2173
        %v2178 = vpack.c.bf16 %v2174, %v2174
        %v2179 = vpack.c.bf16 %v2175, %v2175
        %v2180 = vpack.c.bf16 %v2176, %v2176
        %v2181 = vmul.f32 %v1931, %v1214
        %v2182 = vmul.f32 %v1930, %v1218
        %v2183 = vmul.f32 %v1929, %v1222
        %v2184 = vmul.f32 %v1932, %v1226
        %v2185 = vpack.c.bf16 %v2181, %v2181
        %v2186 = vpack.c.bf16 %v2182, %v2182
        %v2187 = vpack.c.bf16 %v2183, %v2183
        %v2188 = vpack.c.bf16 %v2184, %v2184
        %v2189 = vmul.f32 %v1951, %v1245
        %v2190 = vmul.f32 %v1950, %v1249
        %v2191 = vmul.f32 %v1949, %v1253
        %v2192 = vmul.f32 %v1952, %v1257
        %v2193 = vpack.c.bf16 %v2189, %v2189
        %v2194 = vpack.c.bf16 %v2190, %v2190
        %v2195 = vpack.c.bf16 %v2191, %v2191
        %v2196 = vpack.c.bf16 %v2192, %v2192
        %v2201 = vrot.slane %v1817, 6
        %v2202 = vrot.slane %v1818, 6
        %v2203 = vrot.slane %v1819, 6
        %v2204 = vrot.slane %v1820, 6
        %v2209 = vrot.slane %v1837, 4
        %v2210 = vrot.slane %v1838, 4
        %v2211 = vrot.slane %v1839, 4
        %v2212 = vrot.slane %v1840, 4
        %v2217 = vrot.slane %v1857, 2
        %v2218 = vrot.slane %v1858, 2
        %v2219 = vrot.slane %v1859, 2
        %v2220 = vrot.slane %v1860, 2
        %v2225 = vrot.slane %v1897, 6
        %v2226 = vrot.slane %v1898, 6
        %v2227 = vrot.slane %v1899, 6
        %v2228 = vrot.slane %v1900, 6
        %v2233 = vrot.slane %v1917, 4
        %v2234 = vrot.slane %v1918, 4
        %v2235 = vrot.slane %v1919, 4
        %v2236 = vrot.slane %v1920, 4
        %v2241 = vrot.slane %v1937, 2
        %v2242 = vrot.slane %v1938, 2
        %v2243 = vrot.slane %v1939, 2
        %v2244 = vrot.slane %v1940, 2
        %v2249 = vrot.slane %v1977, 6
        %v2250 = vrot.slane %v1978, 6
        %v2251 = vrot.slane %v1979, 6
        %v2252 = vrot.slane %v1980, 6
        %v2257 = vrot.slane %v1997, 4
        %v2258 = vrot.slane %v1998, 4
        %v2259 = vrot.slane %v1999, 4
        %v2260 = vrot.slane %v2000, 4
        %v2265 = vrot.slane %v2017, 2
        %v2266 = vrot.slane %v2018, 2
        %v2267 = vrot.slane %v2019, 2
        %v2268 = vrot.slane %v2020, 2
        %v2273 = vrot.slane %v2041, 6
        %v2274 = vrot.slane %v2042, 6
        %v2275 = vrot.slane %v2043, 6
        %v2276 = vrot.slane %v2044, 6
        %v2281 = vrot.slane %v2061, 4
        %v2282 = vrot.slane %v2062, 4
        %v2283 = vrot.slane %v2063, 4
        %v2284 = vrot.slane %v2064, 4
        %v2289 = vrot.slane %v2081, 2
        %v2290 = vrot.slane %v2082, 2
        %v2291 = vrot.slane %v2083, 2
        %v2292 = vrot.slane %v2084, 2
        %v2295 = vsel %vm1366, %v1797, %v2201
        %v2298 = vsel %vm1366, %v1798, %v2202
        %v2301 = vsel %vm1366, %v1799, %v2203
        %v2304 = vsel %vm1366, %v1800, %v2204
        %v2306 = vsel %vm1379, %v2295, %v2209
        %v2308 = vsel %vm1379, %v2298, %v2210
        %v2310 = vsel %vm1379, %v2301, %v2211
        %v2312 = vsel %vm1379, %v2304, %v2212
        %v2314 = vsel %vm1388, %v2306, %v2217
        %v2317 = vsel %vm1388, %v2308, %v2218
        %v2320 = vsel %vm1388, %v2310, %v2219
        %v2323 = vsel %vm1388, %v2312, %v2220
        %v2327 = vsel %vm1366, %v1877, %v2225
        %v2330 = vsel %vm1366, %v1878, %v2226
        %v2333 = vsel %vm1366, %v1879, %v2227
        %v2336 = vsel %vm1366, %v1880, %v2228
        %v2338 = vsel %vm1379, %v2327, %v2233
        %v2340 = vsel %vm1379, %v2330, %v2234
        %v2342 = vsel %vm1379, %v2333, %v2235
        %v2344 = vsel %vm1379, %v2336, %v2236
        %v2346 = vsel %vm1388, %v2338, %v2241
        %v2349 = vsel %vm1388, %v2340, %v2242
        %v2352 = vsel %vm1388, %v2342, %v2243
        %v2355 = vsel %vm1388, %v2344, %v2244
        %v2359 = vsel %vm1366, %v1957, %v2249
        %v2362 = vsel %vm1366, %v1958, %v2250
        %v2365 = vsel %vm1366, %v1959, %v2251
        %v2368 = vsel %vm1366, %v1960, %v2252
        %v2370 = vsel %vm1379, %v2359, %v2257
        %v2372 = vsel %vm1379, %v2362, %v2258
        %v2374 = vsel %vm1379, %v2365, %v2259
        %v2376 = vsel %vm1379, %v2368, %v2260
        %v2378 = vsel %vm1388, %v2370, %v2265
        %v2381 = vsel %vm1388, %v2372, %v2266
        %v2384 = vsel %vm1388, %v2374, %v2267
        %v2387 = vsel %vm1388, %v2376, %v2268
        %v2391 = vsel %vm1366, %v2037, %v2273
        %v2394 = vsel %vm1366, %v2038, %v2274
        %v2397 = vsel %vm1366, %v2039, %v2275
        %v2400 = vsel %vm1366, %v2040, %v2276
        %v2402 = vsel %vm1379, %v2391, %v2281
        %v2404 = vsel %vm1379, %v2394, %v2282
        %v2406 = vsel %vm1379, %v2397, %v2283
        %v2408 = vsel %vm1379, %v2400, %v2284
        %v2410 = vsel %vm1388, %v2402, %v2289
        %v2413 = vsel %vm1388, %v2404, %v2290
        %v2416 = vsel %vm1388, %v2406, %v2291
        %v2419 = vsel %vm1388, %v2408, %v2292
        %v2425 = vrot.slane %v2121, 6
        %v2426 = vrot.slane %v2122, 6
        %v2427 = vrot.slane %v2123, 6
        %v2428 = vrot.slane %v2124, 6
        %v2433 = vrot.slane %v2129, 4
        %v2434 = vrot.slane %v2130, 4
        %v2435 = vrot.slane %v2131, 4
        %v2436 = vrot.slane %v2132, 4
        %v2441 = vrot.slane %v2137, 2
        %v2442 = vrot.slane %v2138, 2
        %v2443 = vrot.slane %v2139, 2
        %v2444 = vrot.slane %v2140, 2
        %v2449 = vrot.slane %v2153, 6
        %v2450 = vrot.slane %v2154, 6
        %v2451 = vrot.slane %v2155, 6
        %v2452 = vrot.slane %v2156, 6
        %v2457 = vrot.slane %v2161, 4
        %v2458 = vrot.slane %v2162, 4
        %v2459 = vrot.slane %v2163, 4
        %v2460 = vrot.slane %v2164, 4
        %v2465 = vrot.slane %v2169, 2
        %v2466 = vrot.slane %v2170, 2
        %v2467 = vrot.slane %v2171, 2
        %v2468 = vrot.slane %v2172, 2
        %v2473 = vrot.slane %v2185, 6
        %v2474 = vrot.slane %v2186, 6
        %v2475 = vrot.slane %v2187, 6
        %v2476 = vrot.slane %v2188, 6
        %v2481 = vrot.slane %v2193, 4
        %v2482 = vrot.slane %v2194, 4
        %v2483 = vrot.slane %v2195, 4
        %v2484 = vrot.slane %v2196, 4
        %v2487 = vsel %vm1366, %v2101, %v2425
        %v2490 = vsel %vm1366, %v2102, %v2426
        %v2493 = vsel %vm1366, %v2103, %v2427
        %v2496 = vsel %vm1366, %v2104, %v2428
        %v2498 = vsel %vm1379, %v2487, %v2433
        %v2500 = vsel %vm1379, %v2490, %v2434
        %v2502 = vsel %vm1379, %v2493, %v2435
        %v2504 = vsel %vm1379, %v2496, %v2436
        %v2506 = vsel %vm1388, %v2498, %v2441
        %v2509 = vsel %vm1388, %v2500, %v2442
        %v2512 = vsel %vm1388, %v2502, %v2443
        %v2515 = vsel %vm1388, %v2504, %v2444
        %v2519 = vsel %vm1366, %v2145, %v2449
        %v2522 = vsel %vm1366, %v2146, %v2450
        %v2525 = vsel %vm1366, %v2147, %v2451
        %v2528 = vsel %vm1366, %v2148, %v2452
        %v2530 = vsel %vm1379, %v2519, %v2457
        %v2532 = vsel %vm1379, %v2522, %v2458
        %v2534 = vsel %vm1379, %v2525, %v2459
        %v2536 = vsel %vm1379, %v2528, %v2460
        %v2538 = vsel %vm1388, %v2530, %v2465
        %v2541 = vsel %vm1388, %v2532, %v2466
        %v2544 = vsel %vm1388, %v2534, %v2467
        %v2547 = vsel %vm1388, %v2536, %v2468
        %v2551 = vsel %vm1366, %v2177, %v2473
        %v2554 = vsel %vm1366, %v2178, %v2474
        %v2557 = vsel %vm1366, %v2179, %v2475
        %v2560 = vsel %vm1366, %v2180, %v2476
        %v2562 = vsel %vm1379, %v2551, %v2481
        %v2564 = vsel %vm1379, %v2554, %v2482
        %v2566 = vsel %vm1379, %v2557, %v2483
        %v2568 = vsel %vm1379, %v2560, %v2484
        %v2569 = vld [vmem:[%s3] sm:$0x3]
        %v2571 = vsel %vm1646, %v2569, 0
        %v2573 = vsel %vm1388, %v2562, 0
        %v2575 = vsel %vm1388, %v2564, 0
        %v2577 = vsel %vm1388, %v2566, 0
        %v2579 = vsel %vm1388, %v2568, 0
        %2581 = vmatprep.subr.bf16.mxu0 %v2317
        %2582 = vmatpush1.bf16.msra.mxu0 %v2314
        %2583 = vmatprep.subr.bf16.mxu0 %v2349
        %2584 = vmatpush1.bf16.msra.mxu0 %v2346
        %2585 = vmatprep.subr.bf16.mxu0 %v2381
        %2586 = vmatpush1.bf16.msra.mxu0 %v2378
        %2587 = vmatprep.subr.bf16.mxu0 %v2413
        %2588 = vmatpush1.bf16.msra.mxu0 %v2410
        %2589 = vmatprep.subr.bf16.mxu0 %v2509
        %2590 = vmatpush1.bf16.msra.mxu0 %v2506
        %2591 = vmatprep.subr.bf16.mxu0 %v2541
        %2592 = vmatpush1.bf16.msra.mxu0 %v2538
        %2593 = vmatprep.subr.bf16.mxu0 %v2575
        %2594 = vmatpush1.bf16.msra.mxu0 %v2573
        %2595 = vmatprep.subr.bf16.mxu0 0
        %2596 = vmatpush1.bf16.msra.mxu0 0
        %2597 = vmatprep.subr.bf16.mxu0 0
        %2598 = vmatpush1.bf16.msra.mxu0 0
        %2599 = vmatprep.subr.bf16.mxu0 0
        %2600 = vmatpush1.bf16.msra.mxu0 0
        %2601 = vmatprep.subr.bf16.mxu0 0
        %2602 = vmatpush1.bf16.msra.mxu0 0
        %2603 = vmatprep.subr.bf16.mxu0 0
        %2604 = vmatpush1.bf16.msra.mxu0 0
        %2605 = vmatprep.subr.bf16.mxu0 0
        %2606 = vmatpush1.bf16.msra.mxu0 0
        %2607 = vmatprep.subr.bf16.mxu0 0
        %2608 = vmatpush1.bf16.msra.mxu0 0
        %2609 = vmatprep.subr.bf16.mxu0 0
        %2610 = vmatpush1.bf16.msra.mxu0 0
        %2611 = vmatprep.subr.bf16.mxu0 0
        %2612 = vmatpush1.bf16.msra.mxu0 0
        %2613 = vmatprep.mubr.bf16.mxu0 0
        %2614 = vmatmul.mubr.bf16.gmra.mrb[0].mxu0 %v2571
        %v2615 = vpop.f32.mrb[0].mxu0
        %v2616 = vadd.f32 0.0, %v2615
        %v2617 = vpop.f32.mrb[0].mxu0
        %v2618 = vadd.f32 0.0, %v2617
        %v2619 = vpop.f32.mrb[0].mxu0
        %v2620 = vpop.f32.mrb[0].mxu0
        %2621 = vdwg.mxu0
        %2622 = vmatprep.subr.bf16.mxu0 %v2323
        %2623 = vmatpush1.bf16.msra.mxu0 %v2320
        %2624 = vmatprep.subr.bf16.mxu0 %v2355
        %2625 = vmatpush1.bf16.msra.mxu0 %v2352
        %2626 = vmatprep.subr.bf16.mxu0 %v2387
        %2627 = vmatpush1.bf16.msra.mxu0 %v2384
        %2628 = vmatprep.subr.bf16.mxu0 %v2419
        %2629 = vmatpush1.bf16.msra.mxu0 %v2416
        %2630 = vmatprep.subr.bf16.mxu0 %v2515
        %2631 = vmatpush1.bf16.msra.mxu0 %v2512
        %2632 = vmatprep.subr.bf16.mxu0 %v2547
        %2633 = vmatpush1.bf16.msra.mxu0 %v2544
        %2634 = vmatprep.subr.bf16.mxu0 %v2579
        %2635 = vmatpush1.bf16.msra.mxu0 %v2577
        %2636 = vmatprep.subr.bf16.mxu0 0
        %2637 = vmatpush1.bf16.msra.mxu0 0
        %2638 = vmatprep.subr.bf16.mxu0 0
        %2639 = vmatpush1.bf16.msra.mxu0 0
        %2640 = vmatprep.subr.bf16.mxu0 0
        %2641 = vmatpush1.bf16.msra.mxu0 0
        %2642 = vmatprep.subr.bf16.mxu0 0
        %2643 = vmatpush1.bf16.msra.mxu0 0
        %2644 = vmatprep.subr.bf16.mxu0 0
        %2645 = vmatpush1.bf16.msra.mxu0 0
        %2646 = vmatprep.subr.bf16.mxu0 0
        %2647 = vmatpush1.bf16.msra.mxu0 0
        %2648 = vmatprep.subr.bf16.mxu0 0
        %2649 = vmatpush1.bf16.msra.mxu0 0
        %2650 = vmatprep.subr.bf16.mxu0 0
        %2651 = vmatpush1.bf16.msra.mxu0 0
        %2652 = vmatprep.subr.bf16.mxu0 0
        %2653 = vmatpush1.bf16.msra.mxu0 0
        %2654 = vmatprep.mubr.bf16.mxu0 0
        %2655 = vmatmul.mubr.bf16.gmra.mrb[0].mxu0 %v2571
        %v2656 = vpop.f32.mrb[0].mxu0
        %v2657 = vadd.f32 0.0, %v2656
        %v2658 = vpop.f32.mrb[0].mxu0
        %v2659 = vadd.f32 0.0, %v2658
        %v2660 = vpop.f32.mrb[0].mxu0
        %v2661 = vpop.f32.mrb[0].mxu0
        %2662 = vdwg.mxu0
        %v2663 = vsel %vm1379, %v2616, 0.0
        %v2664 = vsel %vm1379, %v2618, 0.0
        %v2665 = vadd.f32 %v2663, %v2664
        %v2666 = vsel %vm1379, %v2657, 0.0
        %v2667 = vadd.f32 %v2665, %v2666
        %v2668 = vsel %vm1379, %v2659, 0.0
        %v2669 = vadd.f32 %v2667, %v2668
        %2670 = vadd.xlane.f32.xlu0 %v2669
        %v2671 = vpop.xlane.xlu0 %2670
        %v2672 = vmul.f32 %v2616, %v2616
        %v2673 = vmul.f32 %v2618, %v2618
        %v2674 = vmul.f32 %v2657, %v2657
        %v2675 = vmul.f32 %v2659, %v2659
        %v2676 = vsel %vm1379, %v2672, 0.0
        %v2677 = vsel %vm1379, %v2673, 0.0
        %v2678 = vadd.f32 %v2676, %v2677
        %v2679 = vsel %vm1379, %v2674, 0.0
        %v2680 = vadd.f32 %v2678, %v2679
        %v2681 = vsel %vm1379, %v2675, 0.0
        %v2682 = vadd.f32 %v2680, %v2681
        %2683 = vadd.xlane.f32.xlu0 %v2682
        %v2684 = vpop.xlane.xlu0 %2683
        %v2685 = vmul.f32 %v2671, 0.001953125
        %v2686 = vmul.f32 %v2684, 0.001953125
        %v2687 = vmul.f32 %v2685, %v2685
        %v2688 = vsub.f32 %v2686, %v2687
        %v2689 = vmax.f32 %v2688, 0.0
        %v2690 = vsub.f32 %v2616, %v2685
        %v2691 = vsub.f32 %v2618, %v2685
        %v2692 = vsub.f32 %v2657, %v2685
        %v2693 = vsub.f32 %v2659, %v2685
        %v2694 = vadd.f32 %v2689, 1e-05
        %v2695 = vrsqrt.pop %v2694
        %v2696 = vmul.f32 %v2690, %v2695
        %v2697 = vmul.f32 %v2691, %v2695
        %v2698 = vmul.f32 %v2692, %v2695
        %v2699 = vmul.f32 %v2693, %v2695
        %v2704 = vcombine.low %v2696, %v2697
        %v2705 = vcombine.low %v2698, %v2699
        %v2708 = vadd.f32 %v230, %v2704
        %v2709 = vadd.f32 %v231, %v2705
        %2710 = vst [vmem:[%s228] sm:$0xff] %v2708
        %2711 = vst [vmem:[%s228 + $0x8] sm:$0xff] %v2709
        %s2712 = sand.u32 %s119, 1
        %s2713 = scalar_lea.sflag [#allocation4], %s2712
        %s2714 = sand.u32 %s119, 1
        %s2715 = smul.addr %s2714, 16
        %s2716 = scalar_lea.vmem [#allocation7], %s2715
        // Predicated region
        $region45: #{tpu_custom_call.1} parent=35 // pred_check
          %p2717 = pneg %p129
        $region46: #{tpu_custom_call.1} parent=35 // pred_check_branch
          %2719 = sbr.rel (%p2717) target = $region48
        $region47: #{tpu_custom_call.1} parent=35 // pred_region
          %s2721 = ssub.s32 256, 256
          %2722 = vsyncadd %s2713, %s2721
          %s2723 = smul.addr %s22, 4
          %s2724 = smul.addr %s2723, 64
          %s2725 = scalar_lea.hbm %s4, %s2724
          %s2727 = sshll.u32 %s2716, 4
          %s2728 = int_to_ptr.vmem [resolvable:$true] %s2727
          %2730 = dma.vmem_to_hbm [thread:$0]  %s2728, 256, %s2725, %s2713
        $region48: #{tpu_custom_call.1} parent=35 // pred_fallthru
          _
      $region36: #{tpu_custom_call.1} parent=5 // pred_fallthru
        _
      %p2731 = scmp.le.s32.totalorder 2, %s17
      // Predicated region
      $region49: #{tpu_custom_call.1} parent=5 // pred_check
        %p2732 = pneg %p2731
      $region50: #{tpu_custom_call.1} parent=5 // pred_check_branch
        %2734 = sbr.rel (%p2732) target = $region52
      $region51: #{tpu_custom_call.1} parent=5 // pred_region
        %s2735 = ssub.s32 %s17, 2
        // Predicated region
        $region53: #{tpu_custom_call.1} parent=51 // pred_check
          %p2736 = pneg %p135
        $region54: #{tpu_custom_call.1} parent=51 // pred_check_branch
          %2738 = sbr.rel (%p2736) target = $region56
        $region55: #{tpu_custom_call.1} parent=51 // pred_region
          %s2739 = sand.u32 %s120, 1
          %s2740 = scalar_lea.sflag [#allocation4], %s2739
          %s2741 = sand.u32 %s120, 1
          %s2742 = smul.addr %s2741, 16
          %s2743 = scalar_lea.vmem [#allocation7], %s2742
          %2744 = dma.done %s2740, 256
        $region56: #{tpu_custom_call.1} parent=51 // pred_fallthru
          _
      $region52: #{tpu_custom_call.1} parent=5 // pred_fallthru
        _
    $region6: #{tpu_custom_call.1} parent=1 // loop_footer
      %s21 = sadd.s32 1, %s17
    $region7: #{tpu_custom_call.1} parent=1 // loop_footer_branch
      %16 = sbr.rel target = $region3
    $region8: #{tpu_custom_call.1} parent=1 // loop_exit
      _
    %2745 = vsyncpa [#allocation3], 1
    %s2746 = scalar_lea.sflag [#allocation3], 1
    %2747 = vsyncpa %s2746, 1
    %2748 = vsyncpa [#allocation6], 1
    %2749 = vsyncpa [#allocation4], 1
    %s2750 = scalar_lea.sflag [#allocation4], 1
    %2751 = vsyncpa %s2750, 1

</llo_original>
